<compile_context>
chip_gen: v5e
topology: v5e:2x2
jax: 0.10.0
libtpu: 0.0.40
codegen_flags: <defaults>
</compile_context>

<pallas_src>
import functools
import math

import numpy as np
import jax
import jax.numpy as jnp
from jax import lax
from jax.experimental import pallas as pl
from jax.experimental.pallas import tpu as pltpu

LANES = 128
MAX_BLOCK_R = 1024           # max sublane rows per grid step
MAX_CHUNK = 64               # compute-chunk rows (keeps temps in vregs)
NEO_PAD = -100.0             # padding logits (fallback path only): distinct so
NON_PAD = -200.0             # the polyp "winner" never hits the tie branch
LOG2 = math.log(2.0)

ALPHA, BETA, GAMMA, SMOOTH = 0.7, 0.3, 4.0 / 3.0, 1.0


# ------------------------------ Pallas kernel ------------------------------

def _neounet_sums_kernel(*refs, n_heads, block_r, chunk):
    """Accumulates per-batch partial sums for all heads.

    refs = (pred_ref_0..pred_ref_{H-1}, gt_ref, out_ref, acc_ref)
      pred_ref_h: (1, 2, block_r, 128)  logits, channels [neo, non]
      gt_ref    : (1, 2, block_r, 128)  labels, channels [neo, non]
      out_ref   : (1, n_out, 8, 128)    per-batch partial sums (written once)
      acc_ref   : (n_out, 8, 128) f32 VMEM accumulators
        per head h, base = h*9:
          +0 sum(bce_neo)  +1 sum(sig_neo*gt_neo)  +2 sum(sig_neo)
          +3 sum(bce_non)  +4 sum(sig_non*gt_non)  +5 sum(sig_non)
          +6 sum(bce_pol)  +7 sum(sig_pol*gt_pol)  +8 sum(sig_pol)
        last two: sum(gt_neo), sum(gt_non)
    """
    pred_refs = refs[:n_heads]
    gt_ref = refs[n_heads]
    out_ref = refs[n_heads + 1]
    acc_ref = refs[n_heads + 2]

    n_chunks = block_r // chunk
    full = (chunk // 8) * 8          # sublane-aligned part of a chunk
    rem = chunk - full               # ragged remainder (tiny shapes only)

    @pl.when(pl.program_id(1) == 0)
    def _init():
        acc_ref[...] = jnp.zeros_like(acc_ref)

    def accumulate(k, x):
        # x: (chunk, 128) f32 -> folded into acc_ref[k] with pure VPU adds.
        if full:
            acc_ref[k] += jnp.sum(x[:full].reshape(full // 8, 8, LANES), axis=0)
        if rem:
            acc_ref[k, :rem, :] += x[full:]

    def sig_and_t(p):
        # Shared transcendentals: e = exp(-|p|) feeds both sigmoid and the
        # stable-BCE softplus term.  Reciprocal goes to the EUP slot.
        e = jnp.exp(-jnp.abs(p))
        d = 1.0 + e
        r = pl.reciprocal(d, approx=True)
        r = r * (2.0 - d * r)                      # one Newton step (accuracy)
        sig = jnp.where(p >= 0.0, r, e * r)
        t = jnp.maximum(p, 0.0) + jnp.log1p(e)     # max(p,0) + softplus(-|p|)
        return sig, t

    def chunk_body(ci, carry):
        start = ci * chunk
        if not isinstance(start, int):
            start = pl.multiple_of(start, chunk)
        sl = pl.ds(start, chunk)

        gneo = gt_ref[0, 0, sl, :].astype(jnp.float32)
        gnon = gt_ref[0, 1, sl, :].astype(jnp.float32)
        pgt = gneo + gnon

        gt_base = n_heads * 9
        accumulate(gt_base, gneo)
        accumulate(gt_base + 1, gnon)

        for h in range(n_heads):                   # static unroll over heads
            neo = pred_refs[h][0, 0, sl, :].astype(jnp.float32)
            non = pred_refs[h][0, 1, sl, :].astype(jnp.float32)

            sig_neo, t_neo = sig_and_t(neo)
            sig_non, t_non = sig_and_t(non)

            # binary_cross_entropy_with_logits, reduction='none' (stable form)
            bce_neo = t_neo - neo * gneo
            bce_non = t_non - non * gnon

            # polyp_pr = (neo>non)*neo + (non>neo)*non  (tie -> 0, like torch)
            neo_wins = neo > non
            non_wins = non > neo
            polyp = jnp.where(neo_wins, neo, jnp.where(non_wins, non, 0.0))
            sig_pol = jnp.where(neo_wins, sig_neo,
                                jnp.where(non_wins, sig_non, 0.5))
            t_pol = jnp.where(neo_wins, t_neo,
                              jnp.where(non_wins, t_non, LOG2))
            bce_pol = t_pol - polyp * pgt

            base = h * 9
            accumulate(base + 0, bce_neo)
            accumulate(base + 1, sig_neo * gneo)
            accumulate(base + 2, sig_neo)
            accumulate(base + 3, bce_non)
            accumulate(base + 4, sig_non * gnon)
            accumulate(base + 5, sig_non)
            accumulate(base + 6, bce_pol)
            accumulate(base + 7, sig_pol * pgt)
            accumulate(base + 8, sig_pol)
        return carry

    if n_chunks == 1:
        chunk_body(0, 0)
    else:
        lax.fori_loop(0, n_chunks, chunk_body, 0)

    @pl.when(pl.program_id(1) == pl.num_programs(1) - 1)
    def _finalize():
        out_ref[0] = acc_ref[...]


# ------------------------------ JAX glue ------------------------------

def _choose_block_r(rows):
    top = min(rows, MAX_BLOCK_R)
    for cand in range(top, 0, -1):
        if rows % cand == 0 and (cand % 8 == 0 or cand == rows):
            return cand
    return rows


def _choose_chunk(block_r):
    for cand in (MAX_CHUNK, 32, 16, 8):
        if block_r % cand == 0:
            return cand
    return block_r


def _to_tiles(x, pad_c0, pad_c1):
    """(B, C, H, W) -> (B, C, R, 128) with free reshapes (pad only if needed)."""
    b, c, h, w = x.shape
    hw = h * w
    x3 = x.reshape(b, c, hw)                      # free (contiguous) reshape
    pad = (-hw) % LANES
    if pad:
        # TODO(synk): this fallback costs one extra HBM pass; a masked last
        # tile (scalar-prefetched true length) would avoid it.
        ch = jnp.arange(c).reshape(1, c, 1)
        padv = jnp.where(ch == 0, pad_c0, pad_c1).astype(x3.dtype)
        x3 = jnp.concatenate([x3, jnp.broadcast_to(padv, (b, c, pad))], axis=-1)
    rows = (hw + pad) // LANES
    return x3.reshape(b, c, rows, LANES)          # free reshape


def _run_sums_kernel(pred_tiles, gt_tiles):
    """pred_tiles: list of (B, C, R, 128); gt_tiles: (B, C, R, 128)."""
    n_heads = len(pred_tiles)
    bsz, _, rows, _ = pred_tiles[0].shape
    block_r = _choose_block_r(rows)
    n_row_tiles = rows // block_r
    chunk = _choose_chunk(block_r)
    n_out = n_heads * 9 + 2

    kernel = functools.partial(_neounet_sums_kernel,
                               n_heads=n_heads, block_r=block_r, chunk=chunk)

    in_spec = pl.BlockSpec((1, 2, block_r, LANES), lambda b, r: (b, 0, r, 0))
    out_spec = pl.BlockSpec((1, n_out, 8, LANES), lambda b, r: (b, 0, 0, 0))

    part = pl.pallas_call(
        kernel,
        out_shape=jax.ShapeDtypeStruct((bsz, n_out, 8, LANES), jnp.float32),
        grid=(bsz, n_row_tiles),
        in_specs=[in_spec] * (n_heads + 1),
        out_specs=out_spec,
        scratch_shapes=[pltpu.VMEM((n_out, 8, LANES), jnp.float32)],
        compiler_params=pltpu.CompilerParams(
            dimension_semantics=("parallel", "arbitrary"),
            vmem_limit_bytes=48 * 1024 * 1024),
    )(*pred_tiles, gt_tiles)

    # Tiny reduction of the per-batch lane-shaped partials in plain XLA.
    return jnp.sum(part, axis=(0, 2, 3))          # (n_out,)


def _pair_loss(s_bce, tp, s_sig, s_gt, n_elems):
    """CrossEntropyLoss(mean BCE-with-logits) + FocalTverskyLoss from sums."""
    ce = s_bce / n_elems
    fp = s_sig - tp
    fn = s_gt - tp
    ft_score = (tp + SMOOTH) / (tp + ALPHA * fp + BETA * fn + SMOOTH)
    return ce + (1.0 - ft_score) ** GAMMA


@jax.jit
def neounet_loss(y_prs, mask):
    """y_prs: tuple of (B, C>=2, H, W) logits; mask: (B, C>=2, H, W) labels."""
    n_heads = len(y_prs)
    bsz, _, h, w = mask.shape
    if not jnp.issubdtype(mask.dtype, jnp.floating):
        mask = mask.astype(jnp.float32)

    gt_tiles = _to_tiles(mask, 0.0, 0.0)
    pred_tiles = [_to_tiles(y, NEO_PAD, NON_PAD) for y in y_prs]

    sums = _run_sums_kernel(pred_tiles, gt_tiles)
    n = float(bsz * h * w)            # elements of each single-channel slice

    s_gt_neo = sums[n_heads * 9]
    s_gt_non = sums[n_heads * 9 + 1]
    s_gt_pol = s_gt_neo + s_gt_non

    loss = jnp.float32(0.0)
    for hd in range(n_heads):
        b = hd * 9
        main_loss = (_pair_loss(sums[b + 0], sums[b + 1], sums[b + 2],
                                s_gt_neo, n)
                     + _pair_loss(sums[b + 3], sums[b + 4], sums[b + 5],
                                  s_gt_non, n))
        aux_loss = _pair_loss(sums[b + 6], sums[b + 7], sums[b + 8],
                              s_gt_pol, n)
        loss = loss + 0.75 * main_loss + 0.25 * aux_loss
    return loss / 4.0


# ------------------------------ pure-JAX reference ------------------------------

def _ref_loss(y_prs, mask):
    def bce_mean(p, g):
        return jnp.mean(jnp.maximum(p, 0.0) - p * g
                        + jnp.log1p(jnp.exp(-jnp.abs(p))))

    def focal_tversky(p, g):
        s = jax.nn.sigmoid(p)
        tp = jnp.sum(s * g)
        fp = jnp.sum(s) - tp
        fn = jnp.sum(g) - tp
        score = (tp + SMOOTH) / (tp + ALPHA * fp + BETA * fn + SMOOTH)
        return (1.0 - score) ** GAMMA

    neo_gt = mask[:, :1]
    non_gt = mask[:, 1:2]
    polyp_gt = neo_gt + non_gt
    loss = 0.0
    for y in y_prs:
        neo = y[:, :1]
        non = y[:, 1:2]
        polyp = (jnp.where(neo > non, neo, 0.0)
                 + jnp.where(non > neo, non, 0.0))
        aux = bce_mean(polyp, polyp_gt) + focal_tversky(polyp, polyp_gt)
        main = (bce_mean(neo, neo_gt) + focal_tversky(neo, neo_gt)
                + bce_mean(non, non_gt) + focal_tversky(non, non_gt))
        loss += 0.75 * main + 0.25 * aux
    return loss / 4.0


# ------------------------------ main ------------------------------

if __name__ == "__main__":
    key = jax.random.PRNGKey(0)
    B, C, H, W = 2, 2, 16, 16
    n_outputs = 4  # NeoUNet deep-supervision heads

    k_mask, *k_prs = jax.random.split(key, 1 + n_outputs)
    mask = (jax.random.uniform(k_mask, (B, C, H, W)) > 0.5).astype(jnp.float32)
    y_prs = tuple(jax.random.normal(k, (B, C, H, W), dtype=jnp.float32)
                  for k in k_prs)

    loss = jax.block_until_ready(neounet_loss(y_prs, mask))

    ref = jax.block_until_ready(_ref_loss(y_prs, mask))
    assert np.allclose(np.asarray(loss), np.asarray(ref),
                       rtol=1e-4, atol=1e-5), (loss, ref)

    print("KERNEL_OK")
</pallas_src>

<mosaic_0001>
module attributes {stable_mosaic.version = 11 : i64} {
  func.func @_neounet_sums_kernel(%arg0: i32, %arg1: i32, %arg2: memref<1x2x2x128xf32, #tpu.memory_space<vmem>>, %arg3: memref<1x2x2x128xf32, #tpu.memory_space<vmem>>, %arg4: memref<1x2x2x128xf32, #tpu.memory_space<vmem>>, %arg5: memref<1x2x2x128xf32, #tpu.memory_space<vmem>>, %arg6: memref<1x2x2x128xf32, #tpu.memory_space<vmem>>, %arg7: memref<1x38x8x128xf32, #tpu.memory_space<vmem>>, %arg8: memref<38x8x128xf32, #tpu.memory_space<vmem>>) attributes {dimension_semantics = [#tpu.dimension_semantics<parallel>, #tpu.dimension_semantics<arbitrary>], iteration_bounds = array<i64: 2, 1>, scalar_prefetch = 0 : i64, scratch_operands = 1 : i64, tpu.core_type = #tpu.core_type<tc>, window_params = [{transform_indices = @transform_0, window_bounds = array<i64: 1, 2, 2, 128>}, {transform_indices = @transform_1, window_bounds = array<i64: 1, 2, 2, 128>}, {transform_indices = @transform_2, window_bounds = array<i64: 1, 2, 2, 128>}, {transform_indices = @transform_3, window_bounds = array<i64: 1, 2, 2, 128>}, {transform_indices = @transform_4, window_bounds = array<i64: 1, 2, 2, 128>}, {transform_indices = @transform_5, window_bounds = array<i64: 1, 38, 8, 128>}]} {
    %c0_i32 = arith.constant 0 : i32
    %0 = arith.cmpi eq, %arg1, %c0_i32 : i32
    %1 = arith.extui %0 : i1 to i32
    %c0_i32_0 = arith.constant 0 : i32
    %2 = arith.cmpi ne, %1, %c0_i32_0 : i32
    scf.if %2 {
      %cst_284 = arith.constant 0.000000e+00 : f32
      %487 = vector.broadcast %cst_284 : f32 to vector<38x8x128xf32>
      %c0_285 = arith.constant 0 : index
      %c0_286 = arith.constant 0 : index
      %c0_287 = arith.constant 0 : index
      %488 = vector.load %arg8[%c0_285, %c0_286, %c0_287] : memref<38x8x128xf32, #tpu.memory_space<vmem>>, vector<38x8x128xf32>
      tpu.vector_store %arg8[%c0_285, %c0_286, %c0_287], %487 {strides = array<i32>} : memref<38x8x128xf32, #tpu.memory_space<vmem>>, vector<38x8x128xf32>,
    } else {
    }
    %c0 = arith.constant 0 : index
    %c0_1 = arith.constant 0 : index
    %c0_2 = arith.constant 0 : index
    %c0_3 = arith.constant 0 : index
    %3 = vector.load %arg6[%c0, %c0_1, %c0_2, %c0_3] : memref<1x2x2x128xf32, #tpu.memory_space<vmem>>, vector<1x1x2x128xf32>
    %4 = vector.shape_cast %3 : vector<1x1x2x128xf32> to vector<2x128xf32>
    %c0_4 = arith.constant 0 : index
    %c1 = arith.constant 1 : index
    %c0_5 = arith.constant 0 : index
    %c0_6 = arith.constant 0 : index
    %5 = vector.load %arg6[%c0_4, %c1, %c0_5, %c0_6] : memref<1x2x2x128xf32, #tpu.memory_space<vmem>>, vector<1x1x2x128xf32>
    %6 = vector.shape_cast %5 : vector<1x1x2x128xf32> to vector<2x128xf32>
    %7 = arith.addf %4, %6 : vector<2x128xf32>
    %c36 = arith.constant 36 : index
    %c0_7 = arith.constant 0 : index
    %c0_8 = arith.constant 0 : index
    %8 = vector.load %arg8[%c36, %c0_7, %c0_8] : memref<38x8x128xf32, #tpu.memory_space<vmem>>, vector<1x2x128xf32>
    %9 = vector.shape_cast %8 : vector<1x2x128xf32> to vector<2x128xf32>
    %10 = arith.addf %9, %4 : vector<2x128xf32>
    %c36_9 = arith.constant 36 : index
    %c0_10 = arith.constant 0 : index
    %c0_11 = arith.constant 0 : index
    %11 = vector.load %arg8[%c36_9, %c0_10, %c0_11] : memref<38x8x128xf32, #tpu.memory_space<vmem>>, vector<1x2x128xf32>
    %12 = vector.shape_cast %11 : vector<1x2x128xf32> to vector<2x128xf32>
    %13 = vector.shape_cast %10 : vector<2x128xf32> to vector<1x2x128xf32>
    tpu.vector_store %arg8[%c36_9, %c0_10, %c0_11], %13 {strides = array<i32>} : memref<38x8x128xf32, #tpu.memory_space<vmem>>, vector<1x2x128xf32>,
    %c37 = arith.constant 37 : index
    %c0_12 = arith.constant 0 : index
    %c0_13 = arith.constant 0 : index
    %14 = vector.load %arg8[%c37, %c0_12, %c0_13] : memref<38x8x128xf32, #tpu.memory_space<vmem>>, vector<1x2x128xf32>
    %15 = vector.shape_cast %14 : vector<1x2x128xf32> to vector<2x128xf32>
    %16 = arith.addf %15, %6 : vector<2x128xf32>
    %c37_14 = arith.constant 37 : index
    %c0_15 = arith.constant 0 : index
    %c0_16 = arith.constant 0 : index
    %17 = vector.load %arg8[%c37_14, %c0_15, %c0_16] : memref<38x8x128xf32, #tpu.memory_space<vmem>>, vector<1x2x128xf32>
    %18 = vector.shape_cast %17 : vector<1x2x128xf32> to vector<2x128xf32>
    %19 = vector.shape_cast %16 : vector<2x128xf32> to vector<1x2x128xf32>
    tpu.vector_store %arg8[%c37_14, %c0_15, %c0_16], %19 {strides = array<i32>} : memref<38x8x128xf32, #tpu.memory_space<vmem>>, vector<1x2x128xf32>,
    %c0_17 = arith.constant 0 : index
    %c0_18 = arith.constant 0 : index
    %c0_19 = arith.constant 0 : index
    %c0_20 = arith.constant 0 : index
    %20 = vector.load %arg2[%c0_17, %c0_18, %c0_19, %c0_20] : memref<1x2x2x128xf32, #tpu.memory_space<vmem>>, vector<1x1x2x128xf32>
    %21 = vector.shape_cast %20 : vector<1x1x2x128xf32> to vector<2x128xf32>
    %c0_21 = arith.constant 0 : index
    %c1_22 = arith.constant 1 : index
    %c0_23 = arith.constant 0 : index
    %c0_24 = arith.constant 0 : index
    %22 = vector.load %arg2[%c0_21, %c1_22, %c0_23, %c0_24] : memref<1x2x2x128xf32, #tpu.memory_space<vmem>>, vector<1x1x2x128xf32>
    %23 = vector.shape_cast %22 : vector<1x1x2x128xf32> to vector<2x128xf32>
    %24 = math.absf %21 : vector<2x128xf32>
    %cst = arith.constant 0.000000e+00 : f32
    %25 = vector.broadcast %cst : f32 to vector<2x128xf32>
    %26 = arith.subf %25, %24 : vector<2x128xf32>
    %27 = math.exp %26 : vector<2x128xf32>
    %cst_25 = arith.constant 1.000000e+00 : f32
    %28 = vector.broadcast %cst_25 : f32 to vector<2x128xf32>
    %29 = arith.addf %28, %27 : vector<2x128xf32>
    %30 = tpu.reciprocal %29 {approx = true} : vector<2x128xf32> -> vector<2x128xf32>
    %31 = arith.mulf %29, %30 : vector<2x128xf32>
    %cst_26 = arith.constant 2.000000e+00 : f32
    %32 = vector.broadcast %cst_26 : f32 to vector<2x128xf32>
    %33 = arith.subf %32, %31 : vector<2x128xf32>
    %34 = arith.mulf %30, %33 : vector<2x128xf32>
    %cst_27 = arith.constant 0.000000e+00 : f32
    %35 = vector.broadcast %cst_27 : f32 to vector<2x128xf32>
    %36 = arith.cmpf oge, %21, %35 : vector<2x128xf32>
    %37 = arith.mulf %27, %34 : vector<2x128xf32>
    %38 = arith.select %36, %34, %37 : vector<2x128xi1>, vector<2x128xf32>
    %cst_28 = arith.constant 0.000000e+00 : f32
    %39 = vector.broadcast %cst_28 : f32 to vector<2x128xf32>
    %40 = arith.maximumf %21, %39 : vector<2x128xf32>
    %41 = math.log1p %27 : vector<2x128xf32>
    %42 = arith.addf %40, %41 : vector<2x128xf32>
    %43 = math.absf %23 : vector<2x128xf32>
    %cst_29 = arith.constant 0.000000e+00 : f32
    %44 = vector.broadcast %cst_29 : f32 to vector<2x128xf32>
    %45 = arith.subf %44, %43 : vector<2x128xf32>
    %46 = math.exp %45 : vector<2x128xf32>
    %cst_30 = arith.constant 1.000000e+00 : f32
    %47 = vector.broadcast %cst_30 : f32 to vector<2x128xf32>
    %48 = arith.addf %47, %46 : vector<2x128xf32>
    %49 = tpu.reciprocal %48 {approx = true} : vector<2x128xf32> -> vector<2x128xf32>
    %50 = arith.mulf %48, %49 : vector<2x128xf32>
    %cst_31 = arith.constant 2.000000e+00 : f32
    %51 = vector.broadcast %cst_31 : f32 to vector<2x128xf32>
    %52 = arith.subf %51, %50 : vector<2x128xf32>
    %53 = arith.mulf %49, %52 : vector<2x128xf32>
    %cst_32 = arith.constant 0.000000e+00 : f32
    %54 = vector.broadcast %cst_32 : f32 to vector<2x128xf32>
    %55 = arith.cmpf oge, %23, %54 : vector<2x128xf32>
    %56 = arith.mulf %46, %53 : vector<2x128xf32>
    %57 = arith.select %55, %53, %56 : vector<2x128xi1>, vector<2x128xf32>
    %cst_33 = arith.constant 0.000000e+00 : f32
    %58 = vector.broadcast %cst_33 : f32 to vector<2x128xf32>
    %59 = arith.maximumf %23, %58 : vector<2x128xf32>
    %60 = math.log1p %46 : vector<2x128xf32>
    %61 = arith.addf %59, %60 : vector<2x128xf32>
    %62 = arith.mulf %21, %4 : vector<2x128xf32>
    %63 = arith.subf %42, %62 : vector<2x128xf32>
    %64 = arith.mulf %23, %6 : vector<2x128xf32>
    %65 = arith.subf %61, %64 : vector<2x128xf32>
    %66 = arith.cmpf ogt, %21, %23 : vector<2x128xf32>
    %67 = arith.cmpf ogt, %23, %21 : vector<2x128xf32>
    %cst_34 = arith.constant 0.000000e+00 : f32
    %68 = vector.broadcast %cst_34 : f32 to vector<2x128xf32>
    %69 = arith.select %67, %23, %68 : vector<2x128xi1>, vector<2x128xf32>
    %70 = arith.select %66, %21, %69 : vector<2x128xi1>, vector<2x128xf32>
    %cst_35 = arith.constant 5.000000e-01 : f32
    %71 = vector.broadcast %cst_35 : f32 to vector<2x128xf32>
    %72 = arith.select %67, %57, %71 : vector<2x128xi1>, vector<2x128xf32>
    %73 = arith.select %66, %38, %72 : vector<2x128xi1>, vector<2x128xf32>
    %cst_36 = arith.constant 0.693147182 : f32
    %74 = vector.broadcast %cst_36 : f32 to vector<2x128xf32>
    %75 = arith.select %67, %61, %74 : vector<2x128xi1>, vector<2x128xf32>
    %76 = arith.select %66, %42, %75 : vector<2x128xi1>, vector<2x128xf32>
    %77 = arith.mulf %70, %7 : vector<2x128xf32>
    %78 = arith.subf %76, %77 : vector<2x128xf32>
    %c0_37 = arith.constant 0 : index
    %c0_38 = arith.constant 0 : index
    %c0_39 = arith.constant 0 : index
    %79 = vector.load %arg8[%c0_37, %c0_38, %c0_39] : memref<38x8x128xf32, #tpu.memory_space<vmem>>, vector<1x2x128xf32>
    %80 = vector.shape_cast %79 : vector<1x2x128xf32> to vector<2x128xf32>
    %81 = arith.addf %80, %63 : vector<2x128xf32>
    %c0_40 = arith.constant 0 : index
    %c0_41 = arith.constant 0 : index
    %c0_42 = arith.constant 0 : index
    %82 = vector.load %arg8[%c0_40, %c0_41, %c0_42] : memref<38x8x128xf32, #tpu.memory_space<vmem>>, vector<1x2x128xf32>
    %83 = vector.shape_cast %82 : vector<1x2x128xf32> to vector<2x128xf32>
    %84 = vector.shape_cast %81 : vector<2x128xf32> to vector<1x2x128xf32>
    tpu.vector_store %arg8[%c0_40, %c0_41, %c0_42], %84 {strides = array<i32>} : memref<38x8x128xf32, #tpu.memory_space<vmem>>, vector<1x2x128xf32>,
    %85 = arith.mulf %38, %4 : vector<2x128xf32>
    %c1_43 = arith.constant 1 : index
    %c0_44 = arith.constant 0 : index
    %c0_45 = arith.constant 0 : index
    %86 = vector.load %arg8[%c1_43, %c0_44, %c0_45] : memref<38x8x128xf32, #tpu.memory_space<vmem>>, vector<1x2x128xf32>
    %87 = vector.shape_cast %86 : vector<1x2x128xf32> to vector<2x128xf32>
    %88 = arith.addf %87, %85 : vector<2x128xf32>
    %c1_46 = arith.constant 1 : index
    %c0_47 = arith.constant 0 : index
    %c0_48 = arith.constant 0 : index
    %89 = vector.load %arg8[%c1_46, %c0_47, %c0_48] : memref<38x8x128xf32, #tpu.memory_space<vmem>>, vector<1x2x128xf32>
    %90 = vector.shape_cast %89 : vector<1x2x128xf32> to vector<2x128xf32>
    %91 = vector.shape_cast %88 : vector<2x128xf32> to vector<1x2x128xf32>
    tpu.vector_store %arg8[%c1_46, %c0_47, %c0_48], %91 {strides = array<i32>} : memref<38x8x128xf32, #tpu.memory_space<vmem>>, vector<1x2x128xf32>,
    %c2 = arith.constant 2 : index
    %c0_49 = arith.constant 0 : index
    %c0_50 = arith.constant 0 : index
    %92 = vector.load %arg8[%c2, %c0_49, %c0_50] : memref<38x8x128xf32, #tpu.memory_space<vmem>>, vector<1x2x128xf32>
    %93 = vector.shape_cast %92 : vector<1x2x128xf32> to vector<2x128xf32>
    %94 = arith.addf %93, %38 : vector<2x128xf32>
    %c2_51 = arith.constant 2 : index
    %c0_52 = arith.constant 0 : index
    %c0_53 = arith.constant 0 : index
    %95 = vector.load %arg8[%c2_51, %c0_52, %c0_53] : memref<38x8x128xf32, #tpu.memory_space<vmem>>, vector<1x2x128xf32>
    %96 = vector.shape_cast %95 : vector<1x2x128xf32> to vector<2x128xf32>
    %97 = vector.shape_cast %94 : vector<2x128xf32> to vector<1x2x128xf32>
    tpu.vector_store %arg8[%c2_51, %c0_52, %c0_53], %97 {strides = array<i32>} : memref<38x8x128xf32, #tpu.memory_space<vmem>>, vector<1x2x128xf32>,
    %c3 = arith.constant 3 : index
    %c0_54 = arith.constant 0 : index
    %c0_55 = arith.constant 0 : index
    %98 = vector.load %arg8[%c3, %c0_54, %c0_55] : memref<38x8x128xf32, #tpu.memory_space<vmem>>, vector<1x2x128xf32>
    %99 = vector.shape_cast %98 : vector<1x2x128xf32> to vector<2x128xf32>
    %100 = arith.addf %99, %65 : vector<2x128xf32>
    %c3_56 = arith.constant 3 : index
    %c0_57 = arith.constant 0 : index
    %c0_58 = arith.constant 0 : index
    %101 = vector.load %arg8[%c3_56, %c0_57, %c0_58] : memref<38x8x128xf32, #tpu.memory_space<vmem>>, vector<1x2x128xf32>
    %102 = vector.shape_cast %101 : vector<1x2x128xf32> to vector<2x128xf32>
    %103 = vector.shape_cast %100 : vector<2x128xf32> to vector<1x2x128xf32>
    tpu.vector_store %arg8[%c3_56, %c0_57, %c0_58], %103 {strides = array<i32>} : memref<38x8x128xf32, #tpu.memory_space<vmem>>, vector<1x2x128xf32>,
    %104 = arith.mulf %57, %6 : vector<2x128xf32>
    %c4 = arith.constant 4 : index
    %c0_59 = arith.constant 0 : index
    %c0_60 = arith.constant 0 : index
    %105 = vector.load %arg8[%c4, %c0_59, %c0_60] : memref<38x8x128xf32, #tpu.memory_space<vmem>>, vector<1x2x128xf32>
    %106 = vector.shape_cast %105 : vector<1x2x128xf32> to vector<2x128xf32>
    %107 = arith.addf %106, %104 : vector<2x128xf32>
    %c4_61 = arith.constant 4 : index
    %c0_62 = arith.constant 0 : index
    %c0_63 = arith.constant 0 : index
    %108 = vector.load %arg8[%c4_61, %c0_62, %c0_63] : memref<38x8x128xf32, #tpu.memory_space<vmem>>, vector<1x2x128xf32>
    %109 = vector.shape_cast %108 : vector<1x2x128xf32> to vector<2x128xf32>
    %110 = vector.shape_cast %107 : vector<2x128xf32> to vector<1x2x128xf32>
    tpu.vector_store %arg8[%c4_61, %c0_62, %c0_63], %110 {strides = array<i32>} : memref<38x8x128xf32, #tpu.memory_space<vmem>>, vector<1x2x128xf32>,
    %c5 = arith.constant 5 : index
    %c0_64 = arith.constant 0 : index
    %c0_65 = arith.constant 0 : index
    %111 = vector.load %arg8[%c5, %c0_64, %c0_65] : memref<38x8x128xf32, #tpu.memory_space<vmem>>, vector<1x2x128xf32>
    %112 = vector.shape_cast %111 : vector<1x2x128xf32> to vector<2x128xf32>
    %113 = arith.addf %112, %57 : vector<2x128xf32>
    %c5_66 = arith.constant 5 : index
    %c0_67 = arith.constant 0 : index
    %c0_68 = arith.constant 0 : index
    %114 = vector.load %arg8[%c5_66, %c0_67, %c0_68] : memref<38x8x128xf32, #tpu.memory_space<vmem>>, vector<1x2x128xf32>
    %115 = vector.shape_cast %114 : vector<1x2x128xf32> to vector<2x128xf32>
    %116 = vector.shape_cast %113 : vector<2x128xf32> to vector<1x2x128xf32>
    tpu.vector_store %arg8[%c5_66, %c0_67, %c0_68], %116 {strides = array<i32>} : memref<38x8x128xf32, #tpu.memory_space<vmem>>, vector<1x2x128xf32>,
    %c6 = arith.constant 6 : index
    %c0_69 = arith.constant 0 : index
    %c0_70 = arith.constant 0 : index
    %117 = vector.load %arg8[%c6, %c0_69, %c0_70] : memref<38x8x128xf32, #tpu.memory_space<vmem>>, vector<1x2x128xf32>
    %118 = vector.shape_cast %117 : vector<1x2x128xf32> to vector<2x128xf32>
    %119 = arith.addf %118, %78 : vector<2x128xf32>
    %c6_71 = arith.constant 6 : index
    %c0_72 = arith.constant 0 : index
    %c0_73 = arith.constant 0 : index
    %120 = vector.load %arg8[%c6_71, %c0_72, %c0_73] : memref<38x8x128xf32, #tpu.memory_space<vmem>>, vector<1x2x128xf32>
    %121 = vector.shape_cast %120 : vector<1x2x128xf32> to vector<2x128xf32>
    %122 = vector.shape_cast %119 : vector<2x128xf32> to vector<1x2x128xf32>
    tpu.vector_store %arg8[%c6_71, %c0_72, %c0_73], %122 {strides = array<i32>} : memref<38x8x128xf32, #tpu.memory_space<vmem>>, vector<1x2x128xf32>,
    %123 = arith.mulf %73, %7 : vector<2x128xf32>
    %c7 = arith.constant 7 : index
    %c0_74 = arith.constant 0 : index
    %c0_75 = arith.constant 0 : index
    %124 = vector.load %arg8[%c7, %c0_74, %c0_75] : memref<38x8x128xf32, #tpu.memory_space<vmem>>, vector<1x2x128xf32>
    %125 = vector.shape_cast %124 : vector<1x2x128xf32> to vector<2x128xf32>
    %126 = arith.addf %125, %123 : vector<2x128xf32>
    %c7_76 = arith.constant 7 : index
    %c0_77 = arith.constant 0 : index
    %c0_78 = arith.constant 0 : index
    %127 = vector.load %arg8[%c7_76, %c0_77, %c0_78] : memref<38x8x128xf32, #tpu.memory_space<vmem>>, vector<1x2x128xf32>
    %128 = vector.shape_cast %127 : vector<1x2x128xf32> to vector<2x128xf32>
    %129 = vector.shape_cast %126 : vector<2x128xf32> to vector<1x2x128xf32>
    tpu.vector_store %arg8[%c7_76, %c0_77, %c0_78], %129 {strides = array<i32>} : memref<38x8x128xf32, #tpu.memory_space<vmem>>, vector<1x2x128xf32>,
    %c8 = arith.constant 8 : index
    %c0_79 = arith.constant 0 : index
    %c0_80 = arith.constant 0 : index
    %130 = vector.load %arg8[%c8, %c0_79, %c0_80] : memref<38x8x128xf32, #tpu.memory_space<vmem>>, vector<1x2x128xf32>
    %131 = vector.shape_cast %130 : vector<1x2x128xf32> to vector<2x128xf32>
    %132 = arith.addf %131, %73 : vector<2x128xf32>
    %c8_81 = arith.constant 8 : index
    %c0_82 = arith.constant 0 : index
    %c0_83 = arith.constant 0 : index
    %133 = vector.load %arg8[%c8_81, %c0_82, %c0_83] : memref<38x8x128xf32, #tpu.memory_space<vmem>>, vector<1x2x128xf32>
    %134 = vector.shape_cast %133 : vector<1x2x128xf32> to vector<2x128xf32>
    %135 = vector.shape_cast %132 : vector<2x128xf32> to vector<1x2x128xf32>
    tpu.vector_store %arg8[%c8_81, %c0_82, %c0_83], %135 {strides = array<i32>} : memref<38x8x128xf32, #tpu.memory_space<vmem>>, vector<1x2x128xf32>,
    %c0_84 = arith.constant 0 : index
    %c0_85 = arith.constant 0 : index
    %c0_86 = arith.constant 0 : index
    %c0_87 = arith.constant 0 : index
    %136 = vector.load %arg3[%c0_84, %c0_85, %c0_86, %c0_87] : memref<1x2x2x128xf32, #tpu.memory_space<vmem>>, vector<1x1x2x128xf32>
    %137 = vector.shape_cast %136 : vector<1x1x2x128xf32> to vector<2x128xf32>
    %c0_88 = arith.constant 0 : index
    %c1_89 = arith.constant 1 : index
    %c0_90 = arith.constant 0 : index
    %c0_91 = arith.constant 0 : index
    %138 = vector.load %arg3[%c0_88, %c1_89, %c0_90, %c0_91] : memref<1x2x2x128xf32, #tpu.memory_space<vmem>>, vector<1x1x2x128xf32>
    %139 = vector.shape_cast %138 : vector<1x1x2x128xf32> to vector<2x128xf32>
    %140 = math.absf %137 : vector<2x128xf32>
    %cst_92 = arith.constant 0.000000e+00 : f32
    %141 = vector.broadcast %cst_92 : f32 to vector<2x128xf32>
    %142 = arith.subf %141, %140 : vector<2x128xf32>
    %143 = math.exp %142 : vector<2x128xf32>
    %cst_93 = arith.constant 1.000000e+00 : f32
    %144 = vector.broadcast %cst_93 : f32 to vector<2x128xf32>
    %145 = arith.addf %144, %143 : vector<2x128xf32>
    %146 = tpu.reciprocal %145 {approx = true} : vector<2x128xf32> -> vector<2x128xf32>
    %147 = arith.mulf %145, %146 : vector<2x128xf32>
    %cst_94 = arith.constant 2.000000e+00 : f32
    %148 = vector.broadcast %cst_94 : f32 to vector<2x128xf32>
    %149 = arith.subf %148, %147 : vector<2x128xf32>
    %150 = arith.mulf %146, %149 : vector<2x128xf32>
    %cst_95 = arith.constant 0.000000e+00 : f32
    %151 = vector.broadcast %cst_95 : f32 to vector<2x128xf32>
    %152 = arith.cmpf oge, %137, %151 : vector<2x128xf32>
    %153 = arith.mulf %143, %150 : vector<2x128xf32>
    %154 = arith.select %152, %150, %153 : vector<2x128xi1>, vector<2x128xf32>
    %cst_96 = arith.constant 0.000000e+00 : f32
    %155 = vector.broadcast %cst_96 : f32 to vector<2x128xf32>
    %156 = arith.maximumf %137, %155 : vector<2x128xf32>
    %157 = math.log1p %143 : vector<2x128xf32>
    %158 = arith.addf %156, %157 : vector<2x128xf32>
    %159 = math.absf %139 : vector<2x128xf32>
    %cst_97 = arith.constant 0.000000e+00 : f32
    %160 = vector.broadcast %cst_97 : f32 to vector<2x128xf32>
    %161 = arith.subf %160, %159 : vector<2x128xf32>
    %162 = math.exp %161 : vector<2x128xf32>
    %cst_98 = arith.constant 1.000000e+00 : f32
    %163 = vector.broadcast %cst_98 : f32 to vector<2x128xf32>
    %164 = arith.addf %163, %162 : vector<2x128xf32>
    %165 = tpu.reciprocal %164 {approx = true} : vector<2x128xf32> -> vector<2x128xf32>
    %166 = arith.mulf %164, %165 : vector<2x128xf32>
    %cst_99 = arith.constant 2.000000e+00 : f32
    %167 = vector.broadcast %cst_99 : f32 to vector<2x128xf32>
    %168 = arith.subf %167, %166 : vector<2x128xf32>
    %169 = arith.mulf %165, %168 : vector<2x128xf32>
    %cst_100 = arith.constant 0.000000e+00 : f32
    %170 = vector.broadcast %cst_100 : f32 to vector<2x128xf32>
    %171 = arith.cmpf oge, %139, %170 : vector<2x128xf32>
    %172 = arith.mulf %162, %169 : vector<2x128xf32>
    %173 = arith.select %171, %169, %172 : vector<2x128xi1>, vector<2x128xf32>
    %cst_101 = arith.constant 0.000000e+00 : f32
    %174 = vector.broadcast %cst_101 : f32 to vector<2x128xf32>
    %175 = arith.maximumf %139, %174 : vector<2x128xf32>
    %176 = math.log1p %162 : vector<2x128xf32>
    %177 = arith.addf %175, %176 : vector<2x128xf32>
    %178 = arith.mulf %137, %4 : vector<2x128xf32>
    %179 = arith.subf %158, %178 : vector<2x128xf32>
    %180 = arith.mulf %139, %6 : vector<2x128xf32>
    %181 = arith.subf %177, %180 : vector<2x128xf32>
    %182 = arith.cmpf ogt, %137, %139 : vector<2x128xf32>
    %183 = arith.cmpf ogt, %139, %137 : vector<2x128xf32>
    %cst_102 = arith.constant 0.000000e+00 : f32
    %184 = vector.broadcast %cst_102 : f32 to vector<2x128xf32>
    %185 = arith.select %183, %139, %184 : vector<2x128xi1>, vector<2x128xf32>
    %186 = arith.select %182, %137, %185 : vector<2x128xi1>, vector<2x128xf32>
    %cst_103 = arith.constant 5.000000e-01 : f32
    %187 = vector.broadcast %cst_103 : f32 to vector<2x128xf32>
    %188 = arith.select %183, %173, %187 : vector<2x128xi1>, vector<2x128xf32>
    %189 = arith.select %182, %154, %188 : vector<2x128xi1>, vector<2x128xf32>
    %cst_104 = arith.constant 0.693147182 : f32
    %190 = vector.broadcast %cst_104 : f32 to vector<2x128xf32>
    %191 = arith.select %183, %177, %190 : vector<2x128xi1>, vector<2x128xf32>
    %192 = arith.select %182, %158, %191 : vector<2x128xi1>, vector<2x128xf32>
    %193 = arith.mulf %186, %7 : vector<2x128xf32>
    %194 = arith.subf %192, %193 : vector<2x128xf32>
    %c9 = arith.constant 9 : index
    %c0_105 = arith.constant 0 : index
    %c0_106 = arith.constant 0 : index
    %195 = vector.load %arg8[%c9, %c0_105, %c0_106] : memref<38x8x128xf32, #tpu.memory_space<vmem>>, vector<1x2x128xf32>
    %196 = vector.shape_cast %195 : vector<1x2x128xf32> to vector<2x128xf32>
    %197 = arith.addf %196, %179 : vector<2x128xf32>
    %c9_107 = arith.constant 9 : index
    %c0_108 = arith.constant 0 : index
    %c0_109 = arith.constant 0 : index
    %198 = vector.load %arg8[%c9_107, %c0_108, %c0_109] : memref<38x8x128xf32, #tpu.memory_space<vmem>>, vector<1x2x128xf32>
    %199 = vector.shape_cast %198 : vector<1x2x128xf32> to vector<2x128xf32>
    %200 = vector.shape_cast %197 : vector<2x128xf32> to vector<1x2x128xf32>
    tpu.vector_store %arg8[%c9_107, %c0_108, %c0_109], %200 {strides = array<i32>} : memref<38x8x128xf32, #tpu.memory_space<vmem>>, vector<1x2x128xf32>,
    %201 = arith.mulf %154, %4 : vector<2x128xf32>
    %c10 = arith.constant 10 : index
    %c0_110 = arith.constant 0 : index
    %c0_111 = arith.constant 0 : index
    %202 = vector.load %arg8[%c10, %c0_110, %c0_111] : memref<38x8x128xf32, #tpu.memory_space<vmem>>, vector<1x2x128xf32>
    %203 = vector.shape_cast %202 : vector<1x2x128xf32> to vector<2x128xf32>
    %204 = arith.addf %203, %201 : vector<2x128xf32>
    %c10_112 = arith.constant 10 : index
    %c0_113 = arith.constant 0 : index
    %c0_114 = arith.constant 0 : index
    %205 = vector.load %arg8[%c10_112, %c0_113, %c0_114] : memref<38x8x128xf32, #tpu.memory_space<vmem>>, vector<1x2x128xf32>
    %206 = vector.shape_cast %205 : vector<1x2x128xf32> to vector<2x128xf32>
    %207 = vector.shape_cast %204 : vector<2x128xf32> to vector<1x2x128xf32>
    tpu.vector_store %arg8[%c10_112, %c0_113, %c0_114], %207 {strides = array<i32>} : memref<38x8x128xf32, #tpu.memory_space<vmem>>, vector<1x2x128xf32>,
    %c11 = arith.constant 11 : index
    %c0_115 = arith.constant 0 : index
    %c0_116 = arith.constant 0 : index
    %208 = vector.load %arg8[%c11, %c0_115, %c0_116] : memref<38x8x128xf32, #tpu.memory_space<vmem>>, vector<1x2x128xf32>
    %209 = vector.shape_cast %208 : vector<1x2x128xf32> to vector<2x128xf32>
    %210 = arith.addf %209, %154 : vector<2x128xf32>
    %c11_117 = arith.constant 11 : index
    %c0_118 = arith.constant 0 : index
    %c0_119 = arith.constant 0 : index
    %211 = vector.load %arg8[%c11_117, %c0_118, %c0_119] : memref<38x8x128xf32, #tpu.memory_space<vmem>>, vector<1x2x128xf32>
    %212 = vector.shape_cast %211 : vector<1x2x128xf32> to vector<2x128xf32>
    %213 = vector.shape_cast %210 : vector<2x128xf32> to vector<1x2x128xf32>
    tpu.vector_store %arg8[%c11_117, %c0_118, %c0_119], %213 {strides = array<i32>} : memref<38x8x128xf32, #tpu.memory_space<vmem>>, vector<1x2x128xf32>,
    %c12 = arith.constant 12 : index
    %c0_120 = arith.constant 0 : index
    %c0_121 = arith.constant 0 : index
    %214 = vector.load %arg8[%c12, %c0_120, %c0_121] : memref<38x8x128xf32, #tpu.memory_space<vmem>>, vector<1x2x128xf32>
    %215 = vector.shape_cast %214 : vector<1x2x128xf32> to vector<2x128xf32>
    %216 = arith.addf %215, %181 : vector<2x128xf32>
    %c12_122 = arith.constant 12 : index
    %c0_123 = arith.constant 0 : index
    %c0_124 = arith.constant 0 : index
    %217 = vector.load %arg8[%c12_122, %c0_123, %c0_124] : memref<38x8x128xf32, #tpu.memory_space<vmem>>, vector<1x2x128xf32>
    %218 = vector.shape_cast %217 : vector<1x2x128xf32> to vector<2x128xf32>
    %219 = vector.shape_cast %216 : vector<2x128xf32> to vector<1x2x128xf32>
    tpu.vector_store %arg8[%c12_122, %c0_123, %c0_124], %219 {strides = array<i32>} : memref<38x8x128xf32, #tpu.memory_space<vmem>>, vector<1x2x128xf32>,
    %220 = arith.mulf %173, %6 : vector<2x128xf32>
    %c13 = arith.constant 13 : index
    %c0_125 = arith.constant 0 : index
    %c0_126 = arith.constant 0 : index
    %221 = vector.load %arg8[%c13, %c0_125, %c0_126] : memref<38x8x128xf32, #tpu.memory_space<vmem>>, vector<1x2x128xf32>
    %222 = vector.shape_cast %221 : vector<1x2x128xf32> to vector<2x128xf32>
    %223 = arith.addf %222, %220 : vector<2x128xf32>
    %c13_127 = arith.constant 13 : index
    %c0_128 = arith.constant 0 : index
    %c0_129 = arith.constant 0 : index
    %224 = vector.load %arg8[%c13_127, %c0_128, %c0_129] : memref<38x8x128xf32, #tpu.memory_space<vmem>>, vector<1x2x128xf32>
    %225 = vector.shape_cast %224 : vector<1x2x128xf32> to vector<2x128xf32>
    %226 = vector.shape_cast %223 : vector<2x128xf32> to vector<1x2x128xf32>
    tpu.vector_store %arg8[%c13_127, %c0_128, %c0_129], %226 {strides = array<i32>} : memref<38x8x128xf32, #tpu.memory_space<vmem>>, vector<1x2x128xf32>,
    %c14 = arith.constant 14 : index
    %c0_130 = arith.constant 0 : index
    %c0_131 = arith.constant 0 : index
    %227 = vector.load %arg8[%c14, %c0_130, %c0_131] : memref<38x8x128xf32, #tpu.memory_space<vmem>>, vector<1x2x128xf32>
    %228 = vector.shape_cast %227 : vector<1x2x128xf32> to vector<2x128xf32>
    %229 = arith.addf %228, %173 : vector<2x128xf32>
    %c14_132 = arith.constant 14 : index
    %c0_133 = arith.constant 0 : index
    %c0_134 = arith.constant 0 : index
    %230 = vector.load %arg8[%c14_132, %c0_133, %c0_134] : memref<38x8x128xf32, #tpu.memory_space<vmem>>, vector<1x2x128xf32>
    %231 = vector.shape_cast %230 : vector<1x2x128xf32> to vector<2x128xf32>
    %232 = vector.shape_cast %229 : vector<2x128xf32> to vector<1x2x128xf32>
    tpu.vector_store %arg8[%c14_132, %c0_133, %c0_134], %232 {strides = array<i32>} : memref<38x8x128xf32, #tpu.memory_space<vmem>>, vector<1x2x128xf32>,
    %c15 = arith.constant 15 : index
    %c0_135 = arith.constant 0 : index
    %c0_136 = arith.constant 0 : index
    %233 = vector.load %arg8[%c15, %c0_135, %c0_136] : memref<38x8x128xf32, #tpu.memory_space<vmem>>, vector<1x2x128xf32>
    %234 = vector.shape_cast %233 : vector<1x2x128xf32> to vector<2x128xf32>
    %235 = arith.addf %234, %194 : vector<2x128xf32>
    %c15_137 = arith.constant 15 : index
    %c0_138 = arith.constant 0 : index
    %c0_139 = arith.constant 0 : index
    %236 = vector.load %arg8[%c15_137, %c0_138, %c0_139] : memref<38x8x128xf32, #tpu.memory_space<vmem>>, vector<1x2x128xf32>
    %237 = vector.shape_cast %236 : vector<1x2x128xf32> to vector<2x128xf32>
    %238 = vector.shape_cast %235 : vector<2x128xf32> to vector<1x2x128xf32>
    tpu.vector_store %arg8[%c15_137, %c0_138, %c0_139], %238 {strides = array<i32>} : memref<38x8x128xf32, #tpu.memory_space<vmem>>, vector<1x2x128xf32>,
    %239 = arith.mulf %189, %7 : vector<2x128xf32>
    %c16 = arith.constant 16 : index
    %c0_140 = arith.constant 0 : index
    %c0_141 = arith.constant 0 : index
    %240 = vector.load %arg8[%c16, %c0_140, %c0_141] : memref<38x8x128xf32, #tpu.memory_space<vmem>>, vector<1x2x128xf32>
    %241 = vector.shape_cast %240 : vector<1x2x128xf32> to vector<2x128xf32>
    %242 = arith.addf %241, %239 : vector<2x128xf32>
    %c16_142 = arith.constant 16 : index
    %c0_143 = arith.constant 0 : index
    %c0_144 = arith.constant 0 : index
    %243 = vector.load %arg8[%c16_142, %c0_143, %c0_144] : memref<38x8x128xf32, #tpu.memory_space<vmem>>, vector<1x2x128xf32>
    %244 = vector.shape_cast %243 : vector<1x2x128xf32> to vector<2x128xf32>
    %245 = vector.shape_cast %242 : vector<2x128xf32> to vector<1x2x128xf32>
    tpu.vector_store %arg8[%c16_142, %c0_143, %c0_144], %245 {strides = array<i32>} : memref<38x8x128xf32, #tpu.memory_space<vmem>>, vector<1x2x128xf32>,
    %c17 = arith.constant 17 : index
    %c0_145 = arith.constant 0 : index
    %c0_146 = arith.constant 0 : index
    %246 = vector.load %arg8[%c17, %c0_145, %c0_146] : memref<38x8x128xf32, #tpu.memory_space<vmem>>, vector<1x2x128xf32>
    %247 = vector.shape_cast %246 : vector<1x2x128xf32> to vector<2x128xf32>
    %248 = arith.addf %247, %189 : vector<2x128xf32>
    %c17_147 = arith.constant 17 : index
    %c0_148 = arith.constant 0 : index
    %c0_149 = arith.constant 0 : index
    %249 = vector.load %arg8[%c17_147, %c0_148, %c0_149] : memref<38x8x128xf32, #tpu.memory_space<vmem>>, vector<1x2x128xf32>
    %250 = vector.shape_cast %249 : vector<1x2x128xf32> to vector<2x128xf32>
    %251 = vector.shape_cast %248 : vector<2x128xf32> to vector<1x2x128xf32>
    tpu.vector_store %arg8[%c17_147, %c0_148, %c0_149], %251 {strides = array<i32>} : memref<38x8x128xf32, #tpu.memory_space<vmem>>, vector<1x2x128xf32>,
    %c0_150 = arith.constant 0 : index
    %c0_151 = arith.constant 0 : index
    %c0_152 = arith.constant 0 : index
    %c0_153 = arith.constant 0 : index
    %252 = vector.load %arg4[%c0_150, %c0_151, %c0_152, %c0_153] : memref<1x2x2x128xf32, #tpu.memory_space<vmem>>, vector<1x1x2x128xf32>
    %253 = vector.shape_cast %252 : vector<1x1x2x128xf32> to vector<2x128xf32>
    %c0_154 = arith.constant 0 : index
    %c1_155 = arith.constant 1 : index
    %c0_156 = arith.constant 0 : index
    %c0_157 = arith.constant 0 : index
    %254 = vector.load %arg4[%c0_154, %c1_155, %c0_156, %c0_157] : memref<1x2x2x128xf32, #tpu.memory_space<vmem>>, vector<1x1x2x128xf32>
    %255 = vector.shape_cast %254 : vector<1x1x2x128xf32> to vector<2x128xf32>
    %256 = math.absf %253 : vector<2x128xf32>
    %cst_158 = arith.constant 0.000000e+00 : f32
    %257 = vector.broadcast %cst_158 : f32 to vector<2x128xf32>
    %258 = arith.subf %257, %256 : vector<2x128xf32>
    %259 = math.exp %258 : vector<2x128xf32>
    %cst_159 = arith.constant 1.000000e+00 : f32
    %260 = vector.broadcast %cst_159 : f32 to vector<2x128xf32>
    %261 = arith.addf %260, %259 : vector<2x128xf32>
    %262 = tpu.reciprocal %261 {approx = true} : vector<2x128xf32> -> vector<2x128xf32>
    %263 = arith.mulf %261, %262 : vector<2x128xf32>
    %cst_160 = arith.constant 2.000000e+00 : f32
    %264 = vector.broadcast %cst_160 : f32 to vector<2x128xf32>
    %265 = arith.subf %264, %263 : vector<2x128xf32>
    %266 = arith.mulf %262, %265 : vector<2x128xf32>
    %cst_161 = arith.constant 0.000000e+00 : f32
    %267 = vector.broadcast %cst_161 : f32 to vector<2x128xf32>
    %268 = arith.cmpf oge, %253, %267 : vector<2x128xf32>
    %269 = arith.mulf %259, %266 : vector<2x128xf32>
    %270 = arith.select %268, %266, %269 : vector<2x128xi1>, vector<2x128xf32>
    %cst_162 = arith.constant 0.000000e+00 : f32
    %271 = vector.broadcast %cst_162 : f32 to vector<2x128xf32>
    %272 = arith.maximumf %253, %271 : vector<2x128xf32>
    %273 = math.log1p %259 : vector<2x128xf32>
    %274 = arith.addf %272, %273 : vector<2x128xf32>
    %275 = math.absf %255 : vector<2x128xf32>
    %cst_163 = arith.constant 0.000000e+00 : f32
    %276 = vector.broadcast %cst_163 : f32 to vector<2x128xf32>
    %277 = arith.subf %276, %275 : vector<2x128xf32>
    %278 = math.exp %277 : vector<2x128xf32>
    %cst_164 = arith.constant 1.000000e+00 : f32
    %279 = vector.broadcast %cst_164 : f32 to vector<2x128xf32>
    %280 = arith.addf %279, %278 : vector<2x128xf32>
    %281 = tpu.reciprocal %280 {approx = true} : vector<2x128xf32> -> vector<2x128xf32>
    %282 = arith.mulf %280, %281 : vector<2x128xf32>
    %cst_165 = arith.constant 2.000000e+00 : f32
    %283 = vector.broadcast %cst_165 : f32 to vector<2x128xf32>
    %284 = arith.subf %283, %282 : vector<2x128xf32>
    %285 = arith.mulf %281, %284 : vector<2x128xf32>
    %cst_166 = arith.constant 0.000000e+00 : f32
    %286 = vector.broadcast %cst_166 : f32 to vector<2x128xf32>
    %287 = arith.cmpf oge, %255, %286 : vector<2x128xf32>
    %288 = arith.mulf %278, %285 : vector<2x128xf32>
    %289 = arith.select %287, %285, %288 : vector<2x128xi1>, vector<2x128xf32>
    %cst_167 = arith.constant 0.000000e+00 : f32
    %290 = vector.broadcast %cst_167 : f32 to vector<2x128xf32>
    %291 = arith.maximumf %255, %290 : vector<2x128xf32>
    %292 = math.log1p %278 : vector<2x128xf32>
    %293 = arith.addf %291, %292 : vector<2x128xf32>
    %294 = arith.mulf %253, %4 : vector<2x128xf32>
    %295 = arith.subf %274, %294 : vector<2x128xf32>
    %296 = arith.mulf %255, %6 : vector<2x128xf32>
    %297 = arith.subf %293, %296 : vector<2x128xf32>
    %298 = arith.cmpf ogt, %253, %255 : vector<2x128xf32>
    %299 = arith.cmpf ogt, %255, %253 : vector<2x128xf32>
    %cst_168 = arith.constant 0.000000e+00 : f32
    %300 = vector.broadcast %cst_168 : f32 to vector<2x128xf32>
    %301 = arith.select %299, %255, %300 : vector<2x128xi1>, vector<2x128xf32>
    %302 = arith.select %298, %253, %301 : vector<2x128xi1>, vector<2x128xf32>
    %cst_169 = arith.constant 5.000000e-01 : f32
    %303 = vector.broadcast %cst_169 : f32 to vector<2x128xf32>
    %304 = arith.select %299, %289, %303 : vector<2x128xi1>, vector<2x128xf32>
    %305 = arith.select %298, %270, %304 : vector<2x128xi1>, vector<2x128xf32>
    %cst_170 = arith.constant 0.693147182 : f32
    %306 = vector.broadcast %cst_170 : f32 to vector<2x128xf32>
    %307 = arith.select %299, %293, %306 : vector<2x128xi1>, vector<2x128xf32>
    %308 = arith.select %298, %274, %307 : vector<2x128xi1>, vector<2x128xf32>
    %309 = arith.mulf %302, %7 : vector<2x128xf32>
    %310 = arith.subf %308, %309 : vector<2x128xf32>
    %c18 = arith.constant 18 : index
    %c0_171 = arith.constant 0 : index
    %c0_172 = arith.constant 0 : index
    %311 = vector.load %arg8[%c18, %c0_171, %c0_172] : memref<38x8x128xf32, #tpu.memory_space<vmem>>, vector<1x2x128xf32>
    %312 = vector.shape_cast %311 : vector<1x2x128xf32> to vector<2x128xf32>
    %313 = arith.addf %312, %295 : vector<2x128xf32>
    %c18_173 = arith.constant 18 : index
    %c0_174 = arith.constant 0 : index
    %c0_175 = arith.constant 0 : index
    %314 = vector.load %arg8[%c18_173, %c0_174, %c0_175] : memref<38x8x128xf32, #tpu.memory_space<vmem>>, vector<1x2x128xf32>
    %315 = vector.shape_cast %314 : vector<1x2x128xf32> to vector<2x128xf32>
    %316 = vector.shape_cast %313 : vector<2x128xf32> to vector<1x2x128xf32>
    tpu.vector_store %arg8[%c18_173, %c0_174, %c0_175], %316 {strides = array<i32>} : memref<38x8x128xf32, #tpu.memory_space<vmem>>, vector<1x2x128xf32>,
    %317 = arith.mulf %270, %4 : vector<2x128xf32>
    %c19 = arith.constant 19 : index
    %c0_176 = arith.constant 0 : index
    %c0_177 = arith.constant 0 : index
    %318 = vector.load %arg8[%c19, %c0_176, %c0_177] : memref<38x8x128xf32, #tpu.memory_space<vmem>>, vector<1x2x128xf32>
    %319 = vector.shape_cast %318 : vector<1x2x128xf32> to vector<2x128xf32>
    %320 = arith.addf %319, %317 : vector<2x128xf32>
    %c19_178 = arith.constant 19 : index
    %c0_179 = arith.constant 0 : index
    %c0_180 = arith.constant 0 : index
    %321 = vector.load %arg8[%c19_178, %c0_179, %c0_180] : memref<38x8x128xf32, #tpu.memory_space<vmem>>, vector<1x2x128xf32>
    %322 = vector.shape_cast %321 : vector<1x2x128xf32> to vector<2x128xf32>
    %323 = vector.shape_cast %320 : vector<2x128xf32> to vector<1x2x128xf32>
    tpu.vector_store %arg8[%c19_178, %c0_179, %c0_180], %323 {strides = array<i32>} : memref<38x8x128xf32, #tpu.memory_space<vmem>>, vector<1x2x128xf32>,
    %c20 = arith.constant 20 : index
    %c0_181 = arith.constant 0 : index
    %c0_182 = arith.constant 0 : index
    %324 = vector.load %arg8[%c20, %c0_181, %c0_182] : memref<38x8x128xf32, #tpu.memory_space<vmem>>, vector<1x2x128xf32>
    %325 = vector.shape_cast %324 : vector<1x2x128xf32> to vector<2x128xf32>
    %326 = arith.addf %325, %270 : vector<2x128xf32>
    %c20_183 = arith.constant 20 : index
    %c0_184 = arith.constant 0 : index
    %c0_185 = arith.constant 0 : index
    %327 = vector.load %arg8[%c20_183, %c0_184, %c0_185] : memref<38x8x128xf32, #tpu.memory_space<vmem>>, vector<1x2x128xf32>
    %328 = vector.shape_cast %327 : vector<1x2x128xf32> to vector<2x128xf32>
    %329 = vector.shape_cast %326 : vector<2x128xf32> to vector<1x2x128xf32>
    tpu.vector_store %arg8[%c20_183, %c0_184, %c0_185], %329 {strides = array<i32>} : memref<38x8x128xf32, #tpu.memory_space<vmem>>, vector<1x2x128xf32>,
    %c21 = arith.constant 21 : index
    %c0_186 = arith.constant 0 : index
    %c0_187 = arith.constant 0 : index
    %330 = vector.load %arg8[%c21, %c0_186, %c0_187] : memref<38x8x128xf32, #tpu.memory_space<vmem>>, vector<1x2x128xf32>
    %331 = vector.shape_cast %330 : vector<1x2x128xf32> to vector<2x128xf32>
    %332 = arith.addf %331, %297 : vector<2x128xf32>
    %c21_188 = arith.constant 21 : index
    %c0_189 = arith.constant 0 : index
    %c0_190 = arith.constant 0 : index
    %333 = vector.load %arg8[%c21_188, %c0_189, %c0_190] : memref<38x8x128xf32, #tpu.memory_space<vmem>>, vector<1x2x128xf32>
    %334 = vector.shape_cast %333 : vector<1x2x128xf32> to vector<2x128xf32>
    %335 = vector.shape_cast %332 : vector<2x128xf32> to vector<1x2x128xf32>
    tpu.vector_store %arg8[%c21_188, %c0_189, %c0_190], %335 {strides = array<i32>} : memref<38x8x128xf32, #tpu.memory_space<vmem>>, vector<1x2x128xf32>,
    %336 = arith.mulf %289, %6 : vector<2x128xf32>
    %c22 = arith.constant 22 : index
    %c0_191 = arith.constant 0 : index
    %c0_192 = arith.constant 0 : index
    %337 = vector.load %arg8[%c22, %c0_191, %c0_192] : memref<38x8x128xf32, #tpu.memory_space<vmem>>, vector<1x2x128xf32>
    %338 = vector.shape_cast %337 : vector<1x2x128xf32> to vector<2x128xf32>
    %339 = arith.addf %338, %336 : vector<2x128xf32>
    %c22_193 = arith.constant 22 : index
    %c0_194 = arith.constant 0 : index
    %c0_195 = arith.constant 0 : index
    %340 = vector.load %arg8[%c22_193, %c0_194, %c0_195] : memref<38x8x128xf32, #tpu.memory_space<vmem>>, vector<1x2x128xf32>
    %341 = vector.shape_cast %340 : vector<1x2x128xf32> to vector<2x128xf32>
    %342 = vector.shape_cast %339 : vector<2x128xf32> to vector<1x2x128xf32>
    tpu.vector_store %arg8[%c22_193, %c0_194, %c0_195], %342 {strides = array<i32>} : memref<38x8x128xf32, #tpu.memory_space<vmem>>, vector<1x2x128xf32>,
    %c23 = arith.constant 23 : index
    %c0_196 = arith.constant 0 : index
    %c0_197 = arith.constant 0 : index
    %343 = vector.load %arg8[%c23, %c0_196, %c0_197] : memref<38x8x128xf32, #tpu.memory_space<vmem>>, vector<1x2x128xf32>
    %344 = vector.shape_cast %343 : vector<1x2x128xf32> to vector<2x128xf32>
    %345 = arith.addf %344, %289 : vector<2x128xf32>
    %c23_198 = arith.constant 23 : index
    %c0_199 = arith.constant 0 : index
    %c0_200 = arith.constant 0 : index
    %346 = vector.load %arg8[%c23_198, %c0_199, %c0_200] : memref<38x8x128xf32, #tpu.memory_space<vmem>>, vector<1x2x128xf32>
    %347 = vector.shape_cast %346 : vector<1x2x128xf32> to vector<2x128xf32>
    %348 = vector.shape_cast %345 : vector<2x128xf32> to vector<1x2x128xf32>
    tpu.vector_store %arg8[%c23_198, %c0_199, %c0_200], %348 {strides = array<i32>} : memref<38x8x128xf32, #tpu.memory_space<vmem>>, vector<1x2x128xf32>,
    %c24 = arith.constant 24 : index
    %c0_201 = arith.constant 0 : index
    %c0_202 = arith.constant 0 : index
    %349 = vector.load %arg8[%c24, %c0_201, %c0_202] : memref<38x8x128xf32, #tpu.memory_space<vmem>>, vector<1x2x128xf32>
    %350 = vector.shape_cast %349 : vector<1x2x128xf32> to vector<2x128xf32>
    %351 = arith.addf %350, %310 : vector<2x128xf32>
    %c24_203 = arith.constant 24 : index
    %c0_204 = arith.constant 0 : index
    %c0_205 = arith.constant 0 : index
    %352 = vector.load %arg8[%c24_203, %c0_204, %c0_205] : memref<38x8x128xf32, #tpu.memory_space<vmem>>, vector<1x2x128xf32>
    %353 = vector.shape_cast %352 : vector<1x2x128xf32> to vector<2x128xf32>
    %354 = vector.shape_cast %351 : vector<2x128xf32> to vector<1x2x128xf32>
    tpu.vector_store %arg8[%c24_203, %c0_204, %c0_205], %354 {strides = array<i32>} : memref<38x8x128xf32, #tpu.memory_space<vmem>>, vector<1x2x128xf32>,
    %355 = arith.mulf %305, %7 : vector<2x128xf32>
    %c25 = arith.constant 25 : index
    %c0_206 = arith.constant 0 : index
    %c0_207 = arith.constant 0 : index
    %356 = vector.load %arg8[%c25, %c0_206, %c0_207] : memref<38x8x128xf32, #tpu.memory_space<vmem>>, vector<1x2x128xf32>
    %357 = vector.shape_cast %356 : vector<1x2x128xf32> to vector<2x128xf32>
    %358 = arith.addf %357, %355 : vector<2x128xf32>
    %c25_208 = arith.constant 25 : index
    %c0_209 = arith.constant 0 : index
    %c0_210 = arith.constant 0 : index
    %359 = vector.load %arg8[%c25_208, %c0_209, %c0_210] : memref<38x8x128xf32, #tpu.memory_space<vmem>>, vector<1x2x128xf32>
    %360 = vector.shape_cast %359 : vector<1x2x128xf32> to vector<2x128xf32>
    %361 = vector.shape_cast %358 : vector<2x128xf32> to vector<1x2x128xf32>
    tpu.vector_store %arg8[%c25_208, %c0_209, %c0_210], %361 {strides = array<i32>} : memref<38x8x128xf32, #tpu.memory_space<vmem>>, vector<1x2x128xf32>,
    %c26 = arith.constant 26 : index
    %c0_211 = arith.constant 0 : index
    %c0_212 = arith.constant 0 : index
    %362 = vector.load %arg8[%c26, %c0_211, %c0_212] : memref<38x8x128xf32, #tpu.memory_space<vmem>>, vector<1x2x128xf32>
    %363 = vector.shape_cast %362 : vector<1x2x128xf32> to vector<2x128xf32>
    %364 = arith.addf %363, %305 : vector<2x128xf32>
    %c26_213 = arith.constant 26 : index
    %c0_214 = arith.constant 0 : index
    %c0_215 = arith.constant 0 : index
    %365 = vector.load %arg8[%c26_213, %c0_214, %c0_215] : memref<38x8x128xf32, #tpu.memory_space<vmem>>, vector<1x2x128xf32>
    %366 = vector.shape_cast %365 : vector<1x2x128xf32> to vector<2x128xf32>
    %367 = vector.shape_cast %364 : vector<2x128xf32> to vector<1x2x128xf32>
    tpu.vector_store %arg8[%c26_213, %c0_214, %c0_215], %367 {strides = array<i32>} : memref<38x8x128xf32, #tpu.memory_space<vmem>>, vector<1x2x128xf32>,
    %c0_216 = arith.constant 0 : index
    %c0_217 = arith.constant 0 : index
    %c0_218 = arith.constant 0 : index
    %c0_219 = arith.constant 0 : index
    %368 = vector.load %arg5[%c0_216, %c0_217, %c0_218, %c0_219] : memref<1x2x2x128xf32, #tpu.memory_space<vmem>>, vector<1x1x2x128xf32>
    %369 = vector.shape_cast %368 : vector<1x1x2x128xf32> to vector<2x128xf32>
    %c0_220 = arith.constant 0 : index
    %c1_221 = arith.constant 1 : index
    %c0_222 = arith.constant 0 : index
    %c0_223 = arith.constant 0 : index
    %370 = vector.load %arg5[%c0_220, %c1_221, %c0_222, %c0_223] : memref<1x2x2x128xf32, #tpu.memory_space<vmem>>, vector<1x1x2x128xf32>
    %371 = vector.shape_cast %370 : vector<1x1x2x128xf32> to vector<2x128xf32>
    %372 = math.absf %369 : vector<2x128xf32>
    %cst_224 = arith.constant 0.000000e+00 : f32
    %373 = vector.broadcast %cst_224 : f32 to vector<2x128xf32>
    %374 = arith.subf %373, %372 : vector<2x128xf32>
    %375 = math.exp %374 : vector<2x128xf32>
    %cst_225 = arith.constant 1.000000e+00 : f32
    %376 = vector.broadcast %cst_225 : f32 to vector<2x128xf32>
    %377 = arith.addf %376, %375 : vector<2x128xf32>
    %378 = tpu.reciprocal %377 {approx = true} : vector<2x128xf32> -> vector<2x128xf32>
    %379 = arith.mulf %377, %378 : vector<2x128xf32>
    %cst_226 = arith.constant 2.000000e+00 : f32
    %380 = vector.broadcast %cst_226 : f32 to vector<2x128xf32>
    %381 = arith.subf %380, %379 : vector<2x128xf32>
    %382 = arith.mulf %378, %381 : vector<2x128xf32>
    %cst_227 = arith.constant 0.000000e+00 : f32
    %383 = vector.broadcast %cst_227 : f32 to vector<2x128xf32>
    %384 = arith.cmpf oge, %369, %383 : vector<2x128xf32>
    %385 = arith.mulf %375, %382 : vector<2x128xf32>
    %386 = arith.select %384, %382, %385 : vector<2x128xi1>, vector<2x128xf32>
    %cst_228 = arith.constant 0.000000e+00 : f32
    %387 = vector.broadcast %cst_228 : f32 to vector<2x128xf32>
    %388 = arith.maximumf %369, %387 : vector<2x128xf32>
    %389 = math.log1p %375 : vector<2x128xf32>
    %390 = arith.addf %388, %389 : vector<2x128xf32>
    %391 = math.absf %371 : vector<2x128xf32>
    %cst_229 = arith.constant 0.000000e+00 : f32
    %392 = vector.broadcast %cst_229 : f32 to vector<2x128xf32>
    %393 = arith.subf %392, %391 : vector<2x128xf32>
    %394 = math.exp %393 : vector<2x128xf32>
    %cst_230 = arith.constant 1.000000e+00 : f32
    %395 = vector.broadcast %cst_230 : f32 to vector<2x128xf32>
    %396 = arith.addf %395, %394 : vector<2x128xf32>
    %397 = tpu.reciprocal %396 {approx = true} : vector<2x128xf32> -> vector<2x128xf32>
    %398 = arith.mulf %396, %397 : vector<2x128xf32>
    %cst_231 = arith.constant 2.000000e+00 : f32
    %399 = vector.broadcast %cst_231 : f32 to vector<2x128xf32>
    %400 = arith.subf %399, %398 : vector<2x128xf32>
    %401 = arith.mulf %397, %400 : vector<2x128xf32>
    %cst_232 = arith.constant 0.000000e+00 : f32
    %402 = vector.broadcast %cst_232 : f32 to vector<2x128xf32>
    %403 = arith.cmpf oge, %371, %402 : vector<2x128xf32>
    %404 = arith.mulf %394, %401 : vector<2x128xf32>
    %405 = arith.select %403, %401, %404 : vector<2x128xi1>, vector<2x128xf32>
    %cst_233 = arith.constant 0.000000e+00 : f32
    %406 = vector.broadcast %cst_233 : f32 to vector<2x128xf32>
    %407 = arith.maximumf %371, %406 : vector<2x128xf32>
    %408 = math.log1p %394 : vector<2x128xf32>
    %409 = arith.addf %407, %408 : vector<2x128xf32>
    %410 = arith.mulf %369, %4 : vector<2x128xf32>
    %411 = arith.subf %390, %410 : vector<2x128xf32>
    %412 = arith.mulf %371, %6 : vector<2x128xf32>
    %413 = arith.subf %409, %412 : vector<2x128xf32>
    %414 = arith.cmpf ogt, %369, %371 : vector<2x128xf32>
    %415 = arith.cmpf ogt, %371, %369 : vector<2x128xf32>
    %cst_234 = arith.constant 0.000000e+00 : f32
    %416 = vector.broadcast %cst_234 : f32 to vector<2x128xf32>
    %417 = arith.select %415, %371, %416 : vector<2x128xi1>, vector<2x128xf32>
    %418 = arith.select %414, %369, %417 : vector<2x128xi1>, vector<2x128xf32>
    %cst_235 = arith.constant 5.000000e-01 : f32
    %419 = vector.broadcast %cst_235 : f32 to vector<2x128xf32>
    %420 = arith.select %415, %405, %419 : vector<2x128xi1>, vector<2x128xf32>
    %421 = arith.select %414, %386, %420 : vector<2x128xi1>, vector<2x128xf32>
    %cst_236 = arith.constant 0.693147182 : f32
    %422 = vector.broadcast %cst_236 : f32 to vector<2x128xf32>
    %423 = arith.select %415, %409, %422 : vector<2x128xi1>, vector<2x128xf32>
    %424 = arith.select %414, %390, %423 : vector<2x128xi1>, vector<2x128xf32>
    %425 = arith.mulf %418, %7 : vector<2x128xf32>
    %426 = arith.subf %424, %425 : vector<2x128xf32>
    %c27 = arith.constant 27 : index
    %c0_237 = arith.constant 0 : index
    %c0_238 = arith.constant 0 : index
    %427 = vector.load %arg8[%c27, %c0_237, %c0_238] : memref<38x8x128xf32, #tpu.memory_space<vmem>>, vector<1x2x128xf32>
    %428 = vector.shape_cast %427 : vector<1x2x128xf32> to vector<2x128xf32>
    %429 = arith.addf %428, %411 : vector<2x128xf32>
    %c27_239 = arith.constant 27 : index
    %c0_240 = arith.constant 0 : index
    %c0_241 = arith.constant 0 : index
    %430 = vector.load %arg8[%c27_239, %c0_240, %c0_241] : memref<38x8x128xf32, #tpu.memory_space<vmem>>, vector<1x2x128xf32>
    %431 = vector.shape_cast %430 : vector<1x2x128xf32> to vector<2x128xf32>
    %432 = vector.shape_cast %429 : vector<2x128xf32> to vector<1x2x128xf32>
    tpu.vector_store %arg8[%c27_239, %c0_240, %c0_241], %432 {strides = array<i32>} : memref<38x8x128xf32, #tpu.memory_space<vmem>>, vector<1x2x128xf32>,
    %433 = arith.mulf %386, %4 : vector<2x128xf32>
    %c28 = arith.constant 28 : index
    %c0_242 = arith.constant 0 : index
    %c0_243 = arith.constant 0 : index
    %434 = vector.load %arg8[%c28, %c0_242, %c0_243] : memref<38x8x128xf32, #tpu.memory_space<vmem>>, vector<1x2x128xf32>
    %435 = vector.shape_cast %434 : vector<1x2x128xf32> to vector<2x128xf32>
    %436 = arith.addf %435, %433 : vector<2x128xf32>
    %c28_244 = arith.constant 28 : index
    %c0_245 = arith.constant 0 : index
    %c0_246 = arith.constant 0 : index
    %437 = vector.load %arg8[%c28_244, %c0_245, %c0_246] : memref<38x8x128xf32, #tpu.memory_space<vmem>>, vector<1x2x128xf32>
    %438 = vector.shape_cast %437 : vector<1x2x128xf32> to vector<2x128xf32>
    %439 = vector.shape_cast %436 : vector<2x128xf32> to vector<1x2x128xf32>
    tpu.vector_store %arg8[%c28_244, %c0_245, %c0_246], %439 {strides = array<i32>} : memref<38x8x128xf32, #tpu.memory_space<vmem>>, vector<1x2x128xf32>,
    %c29 = arith.constant 29 : index
    %c0_247 = arith.constant 0 : index
    %c0_248 = arith.constant 0 : index
    %440 = vector.load %arg8[%c29, %c0_247, %c0_248] : memref<38x8x128xf32, #tpu.memory_space<vmem>>, vector<1x2x128xf32>
    %441 = vector.shape_cast %440 : vector<1x2x128xf32> to vector<2x128xf32>
    %442 = arith.addf %441, %386 : vector<2x128xf32>
    %c29_249 = arith.constant 29 : index
    %c0_250 = arith.constant 0 : index
    %c0_251 = arith.constant 0 : index
    %443 = vector.load %arg8[%c29_249, %c0_250, %c0_251] : memref<38x8x128xf32, #tpu.memory_space<vmem>>, vector<1x2x128xf32>
    %444 = vector.shape_cast %443 : vector<1x2x128xf32> to vector<2x128xf32>
    %445 = vector.shape_cast %442 : vector<2x128xf32> to vector<1x2x128xf32>
    tpu.vector_store %arg8[%c29_249, %c0_250, %c0_251], %445 {strides = array<i32>} : memref<38x8x128xf32, #tpu.memory_space<vmem>>, vector<1x2x128xf32>,
    %c30 = arith.constant 30 : index
    %c0_252 = arith.constant 0 : index
    %c0_253 = arith.constant 0 : index
    %446 = vector.load %arg8[%c30, %c0_252, %c0_253] : memref<38x8x128xf32, #tpu.memory_space<vmem>>, vector<1x2x128xf32>
    %447 = vector.shape_cast %446 : vector<1x2x128xf32> to vector<2x128xf32>
    %448 = arith.addf %447, %413 : vector<2x128xf32>
    %c30_254 = arith.constant 30 : index
    %c0_255 = arith.constant 0 : index
    %c0_256 = arith.constant 0 : index
    %449 = vector.load %arg8[%c30_254, %c0_255, %c0_256] : memref<38x8x128xf32, #tpu.memory_space<vmem>>, vector<1x2x128xf32>
    %450 = vector.shape_cast %449 : vector<1x2x128xf32> to vector<2x128xf32>
    %451 = vector.shape_cast %448 : vector<2x128xf32> to vector<1x2x128xf32>
    tpu.vector_store %arg8[%c30_254, %c0_255, %c0_256], %451 {strides = array<i32>} : memref<38x8x128xf32, #tpu.memory_space<vmem>>, vector<1x2x128xf32>,
    %452 = arith.mulf %405, %6 : vector<2x128xf32>
    %c31 = arith.constant 31 : index
    %c0_257 = arith.constant 0 : index
    %c0_258 = arith.constant 0 : index
    %453 = vector.load %arg8[%c31, %c0_257, %c0_258] : memref<38x8x128xf32, #tpu.memory_space<vmem>>, vector<1x2x128xf32>
    %454 = vector.shape_cast %453 : vector<1x2x128xf32> to vector<2x128xf32>
    %455 = arith.addf %454, %452 : vector<2x128xf32>
    %c31_259 = arith.constant 31 : index
    %c0_260 = arith.constant 0 : index
    %c0_261 = arith.constant 0 : index
    %456 = vector.load %arg8[%c31_259, %c0_260, %c0_261] : memref<38x8x128xf32, #tpu.memory_space<vmem>>, vector<1x2x128xf32>
    %457 = vector.shape_cast %456 : vector<1x2x128xf32> to vector<2x128xf32>
    %458 = vector.shape_cast %455 : vector<2x128xf32> to vector<1x2x128xf32>
    tpu.vector_store %arg8[%c31_259, %c0_260, %c0_261], %458 {strides = array<i32>} : memref<38x8x128xf32, #tpu.memory_space<vmem>>, vector<1x2x128xf32>,
    %c32 = arith.constant 32 : index
    %c0_262 = arith.constant 0 : index
    %c0_263 = arith.constant 0 : index
    %459 = vector.load %arg8[%c32, %c0_262, %c0_263] : memref<38x8x128xf32, #tpu.memory_space<vmem>>, vector<1x2x128xf32>
    %460 = vector.shape_cast %459 : vector<1x2x128xf32> to vector<2x128xf32>
    %461 = arith.addf %460, %405 : vector<2x128xf32>
    %c32_264 = arith.constant 32 : index
    %c0_265 = arith.constant 0 : index
    %c0_266 = arith.constant 0 : index
    %462 = vector.load %arg8[%c32_264, %c0_265, %c0_266] : memref<38x8x128xf32, #tpu.memory_space<vmem>>, vector<1x2x128xf32>
    %463 = vector.shape_cast %462 : vector<1x2x128xf32> to vector<2x128xf32>
    %464 = vector.shape_cast %461 : vector<2x128xf32> to vector<1x2x128xf32>
    tpu.vector_store %arg8[%c32_264, %c0_265, %c0_266], %464 {strides = array<i32>} : memref<38x8x128xf32, #tpu.memory_space<vmem>>, vector<1x2x128xf32>,
    %c33 = arith.constant 33 : index
    %c0_267 = arith.constant 0 : index
    %c0_268 = arith.constant 0 : index
    %465 = vector.load %arg8[%c33, %c0_267, %c0_268] : memref<38x8x128xf32, #tpu.memory_space<vmem>>, vector<1x2x128xf32>
    %466 = vector.shape_cast %465 : vector<1x2x128xf32> to vector<2x128xf32>
    %467 = arith.addf %466, %426 : vector<2x128xf32>
    %c33_269 = arith.constant 33 : index
    %c0_270 = arith.constant 0 : index
    %c0_271 = arith.constant 0 : index
    %468 = vector.load %arg8[%c33_269, %c0_270, %c0_271] : memref<38x8x128xf32, #tpu.memory_space<vmem>>, vector<1x2x128xf32>
    %469 = vector.shape_cast %468 : vector<1x2x128xf32> to vector<2x128xf32>
    %470 = vector.shape_cast %467 : vector<2x128xf32> to vector<1x2x128xf32>
    tpu.vector_store %arg8[%c33_269, %c0_270, %c0_271], %470 {strides = array<i32>} : memref<38x8x128xf32, #tpu.memory_space<vmem>>, vector<1x2x128xf32>,
    %471 = arith.mulf %421, %7 : vector<2x128xf32>
    %c34 = arith.constant 34 : index
    %c0_272 = arith.constant 0 : index
    %c0_273 = arith.constant 0 : index
    %472 = vector.load %arg8[%c34, %c0_272, %c0_273] : memref<38x8x128xf32, #tpu.memory_space<vmem>>, vector<1x2x128xf32>
    %473 = vector.shape_cast %472 : vector<1x2x128xf32> to vector<2x128xf32>
    %474 = arith.addf %473, %471 : vector<2x128xf32>
    %c34_274 = arith.constant 34 : index
    %c0_275 = arith.constant 0 : index
    %c0_276 = arith.constant 0 : index
    %475 = vector.load %arg8[%c34_274, %c0_275, %c0_276] : memref<38x8x128xf32, #tpu.memory_space<vmem>>, vector<1x2x128xf32>
    %476 = vector.shape_cast %475 : vector<1x2x128xf32> to vector<2x128xf32>
    %477 = vector.shape_cast %474 : vector<2x128xf32> to vector<1x2x128xf32>
    tpu.vector_store %arg8[%c34_274, %c0_275, %c0_276], %477 {strides = array<i32>} : memref<38x8x128xf32, #tpu.memory_space<vmem>>, vector<1x2x128xf32>,
    %c35 = arith.constant 35 : index
    %c0_277 = arith.constant 0 : index
    %c0_278 = arith.constant 0 : index
    %478 = vector.load %arg8[%c35, %c0_277, %c0_278] : memref<38x8x128xf32, #tpu.memory_space<vmem>>, vector<1x2x128xf32>
    %479 = vector.shape_cast %478 : vector<1x2x128xf32> to vector<2x128xf32>
    %480 = arith.addf %479, %421 : vector<2x128xf32>
    %c35_279 = arith.constant 35 : index
    %c0_280 = arith.constant 0 : index
    %c0_281 = arith.constant 0 : index
    %481 = vector.load %arg8[%c35_279, %c0_280, %c0_281] : memref<38x8x128xf32, #tpu.memory_space<vmem>>, vector<1x2x128xf32>
    %482 = vector.shape_cast %481 : vector<1x2x128xf32> to vector<2x128xf32>
    %483 = vector.shape_cast %480 : vector<2x128xf32> to vector<1x2x128xf32>
    tpu.vector_store %arg8[%c35_279, %c0_280, %c0_281], %483 {strides = array<i32>} : memref<38x8x128xf32, #tpu.memory_space<vmem>>, vector<1x2x128xf32>,
    %c0_i32_282 = arith.constant 0 : i32
    %484 = arith.cmpi eq, %arg1, %c0_i32_282 : i32
    %485 = arith.extui %484 : i1 to i32
    %c0_i32_283 = arith.constant 0 : i32
    %486 = arith.cmpi ne, %485, %c0_i32_283 : i32
    scf.if %486 {
      %c0_284 = arith.constant 0 : index
      %c0_285 = arith.constant 0 : index
      %c0_286 = arith.constant 0 : index
      %487 = vector.load %arg8[%c0_284, %c0_285, %c0_286] : memref<38x8x128xf32, #tpu.memory_space<vmem>>, vector<38x8x128xf32>
      %c0_287 = arith.constant 0 : index
      %c0_288 = arith.constant 0 : index
      %c0_289 = arith.constant 0 : index
      %c0_290 = arith.constant 0 : index
      %488 = vector.load %arg7[%c0_287, %c0_288, %c0_289, %c0_290] : memref<1x38x8x128xf32, #tpu.memory_space<vmem>>, vector<1x38x8x128xf32>
      %489 = vector.shape_cast %488 : vector<1x38x8x128xf32> to vector<38x8x128xf32>
      %490 = vector.shape_cast %487 : vector<38x8x128xf32> to vector<1x38x8x128xf32>
      tpu.vector_store %arg7[%c0_287, %c0_288, %c0_289, %c0_290], %490 {strides = array<i32>} : memref<1x38x8x128xf32, #tpu.memory_space<vmem>>, vector<1x38x8x128xf32>,
    } else {
    }
    return
  }
  func.func @transform_0(%arg0: i32, %arg1: i32) -> (i32, i32, i32, i32) {
    %c0_i32 = arith.constant 0 : i32
    %c0_i32_0 = arith.constant 0 : i32
    %c0_i32_1 = arith.constant 0 : i32
    return %arg0, %c0_i32, %arg1, %c0_i32_0 : i32, i32, i32, i32
  }
  func.func @transform_1(%arg0: i32, %arg1: i32) -> (i32, i32, i32, i32) {
    %c0_i32 = arith.constant 0 : i32
    %c0_i32_0 = arith.constant 0 : i32
    %c0_i32_1 = arith.constant 0 : i32
    return %arg0, %c0_i32, %arg1, %c0_i32_0 : i32, i32, i32, i32
  }
  func.func @transform_2(%arg0: i32, %arg1: i32) -> (i32, i32, i32, i32) {
    %c0_i32 = arith.constant 0 : i32
    %c0_i32_0 = arith.constant 0 : i32
    %c0_i32_1 = arith.constant 0 : i32
    return %arg0, %c0_i32, %arg1, %c0_i32_0 : i32, i32, i32, i32
  }
  func.func @transform_3(%arg0: i32, %arg1: i32) -> (i32, i32, i32, i32) {
    %c0_i32 = arith.constant 0 : i32
    %c0_i32_0 = arith.constant 0 : i32
    %c0_i32_1 = arith.constant 0 : i32
    return %arg0, %c0_i32, %arg1, %c0_i32_0 : i32, i32, i32, i32
  }
  func.func @transform_4(%arg0: i32, %arg1: i32) -> (i32, i32, i32, i32) {
    %c0_i32 = arith.constant 0 : i32
    %c0_i32_0 = arith.constant 0 : i32
    %c0_i32_1 = arith.constant 0 : i32
    return %arg0, %c0_i32, %arg1, %c0_i32_0 : i32, i32, i32, i32
  }
  func.func @transform_5(%arg0: i32, %arg1: i32) -> (i32, i32, i32, i32) {
    %c0_i32 = arith.constant 0 : i32
    %c0_i32_0 = arith.constant 0 : i32
    %c0_i32_1 = arith.constant 0 : i32
    %c0_i32_2 = arith.constant 0 : i32
    return %arg0, %c0_i32, %c0_i32_0, %c0_i32_1 : i32, i32, i32, i32
  }
}

</mosaic_0001>

<llo_original>
// kernel: neounet_loss.1
$region0: #{neounet_loss.1}
  #allocation0 [shape = 'u32[]', space=smem, size = 0x4, offset = 0x4, fixed_abs, tag = 'smem constant byte address 0x4 - core index']
  #allocation1 [shape = 'u32[72,128]{1,0:T(1,128)}', space=vmem, size = 0x9000, scoped, tag = 'internal scratch']
  #allocation2 [shape = 'f32[38,8,128]{2,1,0:T(8,128)}', space=vmem, size = 0x26000, scoped, tag = 'scratch operand']
  %s0 = inlined_call_operand.vmem [shape: f32[2,2,2,128], index: 0, kind: input, shape index: {}]
  %s1 = inlined_call_operand.vmem [shape: f32[2,2,2,128], index: 1, kind: input, shape index: {}]
  %s2 = inlined_call_operand.vmem [shape: f32[2,2,2,128], index: 2, kind: input, shape index: {}]
  %s3 = inlined_call_operand.vmem [shape: f32[2,2,2,128], index: 3, kind: input, shape index: {}]
  %s4 = inlined_call_operand.vmem [shape: f32[2,2,2,128], index: 4, kind: input, shape index: {}]
  %s5 = inlined_call_operand.vmem [shape: f32[2,38,8,128], index: 5, kind: output, shape index: {}]
  %s6 = sld [smem:[#allocation0]]
  $region61: #{neounet_loss.1} parent=0
    _
  %s8 = ssub.s32 1, %s6
  %s9 = scalar_select 0, %s8, %s6
  loop: start=0, step=1, limit=4
  $region2: #{neounet_loss.1} parent=0 // loop_pre_header
    _
  $region3: #{neounet_loss.1} parent=0 // loop_header
    %s11 = sphi 0, %s15
    %p12 = scmp.ge.s32.totalorder %s11, 4
    %s18 = sphi 0, %s30
    %s19 = sphi 0, %s26
    %s20 = sphi 0, %s18
    %s21 = sphi 0, %s19
    %s22 = sphi 0, %s20
    %s23 = sphi 0, %s21
    %s35 = sphi 0, %s37
    %s38 = sphi 0, %s35
    %s39 = sphi 0, %s38
    %s55 = sphi 0, %s39
    %s63 = sphi 0, %s65
    %s66 = sphi 0, %s63
    %s67 = sphi 0, %s66
    %s83 = sphi 0, %s67
    %s91 = sphi 0, %s93
    %s94 = sphi 0, %s91
    %s95 = sphi 0, %s94
    %s111 = sphi 0, %s95
    %s119 = sphi 0, %s121
    %s122 = sphi 0, %s119
    %s123 = sphi 0, %s122
    %s139 = sphi 0, %s123
    %s147 = sphi 0, %s149
    %s150 = sphi 0, %s147
    %s151 = sphi 0, %s150
    %s167 = sphi 0, %s151
    %s173 = sphi 0, %s175
    %s176 = sphi 0, %s173
    %s177 = sphi 0, %s176
    %s193 = sphi 0, %s177
  $region4: #{neounet_loss.1} parent=0 // loop_header_branch
    %14 = sbr.rel (%p12) target = $region8
  $region5: #{neounet_loss.1} parent=0 // loop_body
    %s16 = ssub.s32 %s11, 1
    %s17 = ssub.s32 %s11, 2
    %s24 = sadd.s32 1, %s19
    %p25 = scmp.ge.s32.totalorder %s24, 1
    %s26 = scalar_select %p25, 0, %s24
    %s27 = sadd.s32 1, %s18
    %s28 = scalar_select %p25, %s27, %s18
    %p29 = scmp.ge.s32.totalorder %s28, 2
    %s30 = scalar_select %p29, 0, %s28
    %s31 = ssub.s32 %s18, %s30
    %s32 = ssub.s32 %s19, %s26
    %s33 = sor.u32 %s31, %s32
    %p34 = scmp.eq.s32.totalorder %s33, 0
    %s36 = sadd.s32 %s35, 1
    %s37 = scalar_select %p34, %s35, %s36
    %p40 = pneg %p34
    %p41 = scmp.eq.s32.totalorder %s11, 1
    %p42 = por %p40, %p41
    %p43 = scmp.ne.s32.totalorder %s35, %s38
    %p44 = scmp.eq.s32.totalorder %s11, 0
    %p45 = por %p43, %p44
    %p46 = scmp.ne.s32.totalorder %s35, %s38
    %p47 = scmp.eq.s32.totalorder %s16, 1
    %p48 = por %p46, %p47
    %p49 = scmp.ne.s32.totalorder %s38, %s39
    %p50 = scmp.eq.s32.totalorder %s16, 0
    %p51 = por %p49, %p50
    %p52 = scmp.ne.s32.totalorder %s38, %s39
    %p53 = scmp.eq.s32.totalorder %s17, 1
    %p54 = por %p52, %p53
    %p56 = scmp.ne.s32.totalorder %s39, %s55
    %p57 = scmp.eq.s32.totalorder %s17, 0
    %p58 = por %p56, %p57
    %s59 = ssub.s32 %s18, %s30
    %s60 = ssub.s32 %s19, %s26
    %s61 = sor.u32 %s59, %s60
    %p62 = scmp.eq.s32.totalorder %s61, 0
    %s64 = sadd.s32 %s63, 1
    %s65 = scalar_select %p62, %s63, %s64
    %p68 = pneg %p62
    %p69 = scmp.eq.s32.totalorder %s11, 1
    %p70 = por %p68, %p69
    %p71 = scmp.ne.s32.totalorder %s63, %s66
    %p72 = scmp.eq.s32.totalorder %s11, 0
    %p73 = por %p71, %p72
    %p74 = scmp.ne.s32.totalorder %s63, %s66
    %p75 = scmp.eq.s32.totalorder %s16, 1
    %p76 = por %p74, %p75
    %p77 = scmp.ne.s32.totalorder %s66, %s67
    %p78 = scmp.eq.s32.totalorder %s16, 0
    %p79 = por %p77, %p78
    %p80 = scmp.ne.s32.totalorder %s66, %s67
    %p81 = scmp.eq.s32.totalorder %s17, 1
    %p82 = por %p80, %p81
    %p84 = scmp.ne.s32.totalorder %s67, %s83
    %p85 = scmp.eq.s32.totalorder %s17, 0
    %p86 = por %p84, %p85
    %s87 = ssub.s32 %s18, %s30
    %s88 = ssub.s32 %s19, %s26
    %s89 = sor.u32 %s87, %s88
    %p90 = scmp.eq.s32.totalorder %s89, 0
    %s92 = sadd.s32 %s91, 1
    %s93 = scalar_select %p90, %s91, %s92
    %p96 = pneg %p90
    %p97 = scmp.eq.s32.totalorder %s11, 1
    %p98 = por %p96, %p97
    %p99 = scmp.ne.s32.totalorder %s91, %s94
    %p100 = scmp.eq.s32.totalorder %s11, 0
    %p101 = por %p99, %p100
    %p102 = scmp.ne.s32.totalorder %s91, %s94
    %p103 = scmp.eq.s32.totalorder %s16, 1
    %p104 = por %p102, %p103
    %p105 = scmp.ne.s32.totalorder %s94, %s95
    %p106 = scmp.eq.s32.totalorder %s16, 0
    %p107 = por %p105, %p106
    %p108 = scmp.ne.s32.totalorder %s94, %s95
    %p109 = scmp.eq.s32.totalorder %s17, 1
    %p110 = por %p108, %p109
    %p112 = scmp.ne.s32.totalorder %s95, %s111
    %p113 = scmp.eq.s32.totalorder %s17, 0
    %p114 = por %p112, %p113
    %s115 = ssub.s32 %s18, %s30
    %s116 = ssub.s32 %s19, %s26
    %s117 = sor.u32 %s115, %s116
    %p118 = scmp.eq.s32.totalorder %s117, 0
    %s120 = sadd.s32 %s119, 1
    %s121 = scalar_select %p118, %s119, %s120
    %p124 = pneg %p118
    %p125 = scmp.eq.s32.totalorder %s11, 1
    %p126 = por %p124, %p125
    %p127 = scmp.ne.s32.totalorder %s119, %s122
    %p128 = scmp.eq.s32.totalorder %s11, 0
    %p129 = por %p127, %p128
    %p130 = scmp.ne.s32.totalorder %s119, %s122
    %p131 = scmp.eq.s32.totalorder %s16, 1
    %p132 = por %p130, %p131
    %p133 = scmp.ne.s32.totalorder %s122, %s123
    %p134 = scmp.eq.s32.totalorder %s16, 0
    %p135 = por %p133, %p134
    %p136 = scmp.ne.s32.totalorder %s122, %s123
    %p137 = scmp.eq.s32.totalorder %s17, 1
    %p138 = por %p136, %p137
    %p140 = scmp.ne.s32.totalorder %s123, %s139
    %p141 = scmp.eq.s32.totalorder %s17, 0
    %p142 = por %p140, %p141
    %s143 = ssub.s32 %s18, %s30
    %s144 = ssub.s32 %s19, %s26
    %s145 = sor.u32 %s143, %s144
    %p146 = scmp.eq.s32.totalorder %s145, 0
    %s148 = sadd.s32 %s147, 1
    %s149 = scalar_select %p146, %s147, %s148
    %p152 = pneg %p146
    %p153 = scmp.eq.s32.totalorder %s11, 1
    %p154 = por %p152, %p153
    %p155 = scmp.ne.s32.totalorder %s147, %s150
    %p156 = scmp.eq.s32.totalorder %s11, 0
    %p157 = por %p155, %p156
    %p158 = scmp.ne.s32.totalorder %s147, %s150
    %p159 = scmp.eq.s32.totalorder %s16, 1
    %p160 = por %p158, %p159
    %p161 = scmp.ne.s32.totalorder %s150, %s151
    %p162 = scmp.eq.s32.totalorder %s16, 0
    %p163 = por %p161, %p162
    %p164 = scmp.ne.s32.totalorder %s150, %s151
    %p165 = scmp.eq.s32.totalorder %s17, 1
    %p166 = por %p164, %p165
    %p168 = scmp.ne.s32.totalorder %s151, %s167
    %p169 = scmp.eq.s32.totalorder %s17, 0
    %p170 = por %p168, %p169
    %s171 = ssub.s32 %s18, %s30
    %p172 = scmp.eq.s32.totalorder %s171, 0
    %s174 = sadd.s32 %s173, 1
    %s175 = scalar_select %p172, %s173, %s174
    %p178 = pneg %p172
    %p179 = scmp.eq.s32.totalorder %s11, 1
    %p180 = por %p178, %p179
    %p181 = scmp.ne.s32.totalorder %s173, %s176
    %p182 = scmp.eq.s32.totalorder %s11, 0
    %p183 = por %p181, %p182
    %p184 = scmp.ne.s32.totalorder %s173, %s176
    %p185 = scmp.eq.s32.totalorder %s16, 1
    %p186 = por %p184, %p185
    %p187 = scmp.ne.s32.totalorder %s176, %s177
    %p188 = scmp.eq.s32.totalorder %s16, 0
    %p189 = por %p187, %p188
    %p190 = scmp.ne.s32.totalorder %s176, %s177
    %p191 = scmp.eq.s32.totalorder %s17, 1
    %p192 = por %p190, %p191
    %p194 = scmp.ne.s32.totalorder %s177, %s193
    %p195 = scmp.eq.s32.totalorder %s17, 0
    %p196 = por %p194, %p195
    %p197 = scmp.le.s32.totalorder 1, %s11
    %p198 = scmp.lt.s32.totalorder %s11, 3
    %p199 = pnand %p197, %p198
    %p200 = pneg %p199
    // Predicated region
    $region9: #{neounet_loss.1} parent=5 // pred_check
      _
    $region10: #{neounet_loss.1} parent=5 // pred_check_branch
      %202 = sbr.rel (%p199) target = $region12
    $region11: #{neounet_loss.1} parent=5 // pred_region
      %s203 = ssub.s32 %s11, 1
    $region12: #{neounet_loss.1} parent=5 // pred_fallthru
      _
    %p204 = scmp.lt.s32.totalorder %s11, 2
    // Predicated region
    $region13: #{neounet_loss.1} parent=5 // pred_check
      %p205 = pneg %p204
    $region14: #{neounet_loss.1} parent=5 // pred_check_branch
      %207 = sbr.rel (%p205) target = $region16
    $region15: #{neounet_loss.1} parent=5 // pred_region
      // Predicated region
      $region17: #{neounet_loss.1} parent=15 // pred_check
        %p208 = pneg %p45
      $region18: #{neounet_loss.1} parent=15 // pred_check_branch
        %210 = sbr.rel (%p208) target = $region20
      $region19: #{neounet_loss.1} parent=15 // pred_region
        %p211 = scmp.lt.s32.totalorder %s18, 1
        %s212 = scalar_select %p211, %s18, 1
        %p213 = scmp.lt.s32.totalorder %s19, 0
        %s214 = scalar_select %p213, %s19, 0
        %s215 = smul.addr %s212, 2
        %s216 = sadd.s32 %s214, %s215
        %s217 = smul.addr %s216, 2
        %s218 = scalar_lea.vmem %s0, %s217
      $region20: #{neounet_loss.1} parent=15 // pred_fallthru
        _
      // Predicated region
      $region21: #{neounet_loss.1} parent=15 // pred_check
        %p219 = pneg %p73
      $region22: #{neounet_loss.1} parent=15 // pred_check_branch
        %221 = sbr.rel (%p219) target = $region24
      $region23: #{neounet_loss.1} parent=15 // pred_region
        %p222 = scmp.lt.s32.totalorder %s18, 1
        %s223 = scalar_select %p222, %s18, 1
        %p224 = scmp.lt.s32.totalorder %s19, 0
        %s225 = scalar_select %p224, %s19, 0
        %s226 = smul.addr %s223, 2
        %s227 = sadd.s32 %s225, %s226
        %s228 = smul.addr %s227, 2
        %s229 = scalar_lea.vmem %s1, %s228
      $region24: #{neounet_loss.1} parent=15 // pred_fallthru
        _
      // Predicated region
      $region25: #{neounet_loss.1} parent=15 // pred_check
        %p230 = pneg %p101
      $region26: #{neounet_loss.1} parent=15 // pred_check_branch
        %232 = sbr.rel (%p230) target = $region28
      $region27: #{neounet_loss.1} parent=15 // pred_region
        %p233 = scmp.lt.s32.totalorder %s18, 1
        %s234 = scalar_select %p233, %s18, 1
        %p235 = scmp.lt.s32.totalorder %s19, 0
        %s236 = scalar_select %p235, %s19, 0
        %s237 = smul.addr %s234, 2
        %s238 = sadd.s32 %s236, %s237
        %s239 = smul.addr %s238, 2
        %s240 = scalar_lea.vmem %s2, %s239
      $region28: #{neounet_loss.1} parent=15 // pred_fallthru
        _
      // Predicated region
      $region29: #{neounet_loss.1} parent=15 // pred_check
        %p241 = pneg %p129
      $region30: #{neounet_loss.1} parent=15 // pred_check_branch
        %243 = sbr.rel (%p241) target = $region32
      $region31: #{neounet_loss.1} parent=15 // pred_region
        %p244 = scmp.lt.s32.totalorder %s18, 1
        %s245 = scalar_select %p244, %s18, 1
        %p246 = scmp.lt.s32.totalorder %s19, 0
        %s247 = scalar_select %p246, %s19, 0
        %s248 = smul.addr %s245, 2
        %s249 = sadd.s32 %s247, %s248
        %s250 = smul.addr %s249, 2
        %s251 = scalar_lea.vmem %s3, %s250
      $region32: #{neounet_loss.1} parent=15 // pred_fallthru
        _
      // Predicated region
      $region33: #{neounet_loss.1} parent=15 // pred_check
        %p252 = pneg %p157
      $region34: #{neounet_loss.1} parent=15 // pred_check_branch
        %254 = sbr.rel (%p252) target = $region36
      $region35: #{neounet_loss.1} parent=15 // pred_region
        %p255 = scmp.lt.s32.totalorder %s18, 1
        %s256 = scalar_select %p255, %s18, 1
        %p257 = scmp.lt.s32.totalorder %s19, 0
        %s258 = scalar_select %p257, %s19, 0
        %s259 = smul.addr %s256, 2
        %s260 = sadd.s32 %s258, %s259
        %s261 = smul.addr %s260, 2
        %s262 = scalar_lea.vmem %s4, %s261
      $region36: #{neounet_loss.1} parent=15 // pred_fallthru
        _
    $region16: #{neounet_loss.1} parent=5 // pred_fallthru
      _
    %p263 = scmp.le.s32.totalorder 1, %s11
    %p264 = scmp.lt.s32.totalorder %s11, 3
    %p265 = pnand %p263, %p264
    %p266 = pneg %p265
    // Predicated region
    $region37: #{neounet_loss.1} parent=5 // pred_check
      _
    $region38: #{neounet_loss.1} parent=5 // pred_check_branch
      %268 = sbr.rel (%p265) target = $region40
    $region39: #{neounet_loss.1} parent=5 // pred_region
      %s269 = ssub.s32 %s11, 1
      %p270 = scmp.lt.s32.totalorder %s20, 1
      %s271 = scalar_select %p270, %s20, 1
      %p272 = scmp.lt.s32.totalorder %s21, 0
      %s273 = scalar_select %p272, %s21, 0
      %s274 = smul.addr %s271, 2
      %s275 = sadd.s32 %s273, %s274
      %s276 = smul.addr %s275, 2
      %s277 = scalar_lea.vmem %s0, %s276
      %p278 = pneg %p51
      %p279 = pneg %p48
      %p280 = scmp.lt.s32.totalorder %s20, 1
      %s281 = scalar_select %p280, %s20, 1
      %p282 = scmp.lt.s32.totalorder %s21, 0
      %s283 = scalar_select %p282, %s21, 0
      %s284 = smul.addr %s281, 2
      %s285 = sadd.s32 %s283, %s284
      %s286 = smul.addr %s285, 2
      %s287 = scalar_lea.vmem %s1, %s286
      %p288 = pneg %p79
      %p289 = pneg %p76
      %p290 = scmp.lt.s32.totalorder %s20, 1
      %s291 = scalar_select %p290, %s20, 1
      %p292 = scmp.lt.s32.totalorder %s21, 0
      %s293 = scalar_select %p292, %s21, 0
      %s294 = smul.addr %s291, 2
      %s295 = sadd.s32 %s293, %s294
      %s296 = smul.addr %s295, 2
      %s297 = scalar_lea.vmem %s2, %s296
      %p298 = pneg %p107
      %p299 = pneg %p104
      %p300 = scmp.lt.s32.totalorder %s20, 1
      %s301 = scalar_select %p300, %s20, 1
      %p302 = scmp.lt.s32.totalorder %s21, 0
      %s303 = scalar_select %p302, %s21, 0
      %s304 = smul.addr %s301, 2
      %s305 = sadd.s32 %s303, %s304
      %s306 = smul.addr %s305, 2
      %s307 = scalar_lea.vmem %s3, %s306
      %p308 = pneg %p135
      %p309 = pneg %p132
      %p310 = scmp.lt.s32.totalorder %s20, 1
      %s311 = scalar_select %p310, %s20, 1
      %p312 = scmp.lt.s32.totalorder %s21, 0
      %s313 = scalar_select %p312, %s21, 0
      %s314 = smul.addr %s311, 2
      %s315 = sadd.s32 %s313, %s314
      %s316 = smul.addr %s315, 2
      %s317 = scalar_lea.vmem %s4, %s316
      %p318 = pneg %p163
      %p319 = pneg %p160
      %p320 = pneg %p189
      %p321 = pneg %p186
      %p322 = scmp.lt.s32.totalorder %s20, 1
      %s323 = scalar_select %p322, %s20, 1
      %s324 = smul.addr %s323, 38
      %s325 = smul.addr %s324, 8
      %s326 = scalar_lea.vmem %s5, %s325
      %p327 = scmp.lt.s32.totalorder %s20, 1
      %s328 = scalar_select %p327, %s20, 1
      %p329 = scmp.lt.s32.totalorder %s21, 0
      %s330 = scalar_select %p329, %s21, 0
      %s331 = smul.addr %s328, 2
      %s332 = sadd.s32 %s330, %s331
      %s333 = smul.addr %s332, 2
      %s334 = scalar_lea.vmem %s0, %s333
      %p335 = scmp.lt.s32.totalorder %s20, 1
      %s336 = scalar_select %p335, %s20, 1
      %p337 = scmp.lt.s32.totalorder %s21, 0
      %s338 = scalar_select %p337, %s21, 0
      %s339 = smul.addr %s336, 2
      %s340 = sadd.s32 %s338, %s339
      %s341 = smul.addr %s340, 2
      %s342 = scalar_lea.vmem %s1, %s341
      %p343 = scmp.lt.s32.totalorder %s20, 1
      %s344 = scalar_select %p343, %s20, 1
      %p345 = scmp.lt.s32.totalorder %s21, 0
      %s346 = scalar_select %p345, %s21, 0
      %s347 = smul.addr %s344, 2
      %s348 = sadd.s32 %s346, %s347
      %s349 = smul.addr %s348, 2
      %s350 = scalar_lea.vmem %s2, %s349
      %p351 = scmp.lt.s32.totalorder %s20, 1
      %s352 = scalar_select %p351, %s20, 1
      %p353 = scmp.lt.s32.totalorder %s21, 0
      %s354 = scalar_select %p353, %s21, 0
      %s355 = smul.addr %s352, 2
      %s356 = sadd.s32 %s354, %s355
      %s357 = smul.addr %s356, 2
      %s358 = scalar_lea.vmem %s3, %s357
      %p359 = scmp.lt.s32.totalorder %s20, 1
      %s360 = scalar_select %p359, %s20, 1
      %p361 = scmp.lt.s32.totalorder %s21, 0
      %s362 = scalar_select %p361, %s21, 0
      %s363 = smul.addr %s360, 2
      %s364 = sadd.s32 %s362, %s363
      %s365 = smul.addr %s364, 2
      %s366 = scalar_lea.vmem %s4, %s365
      %p367 = scmp.lt.s32.totalorder %s20, 1
      %s368 = scalar_select %p367, %s20, 1
      %s369 = smul.addr %s368, 38
      %s370 = smul.addr %s369, 8
      %s371 = scalar_lea.vmem %s5, %s370
      %p372 = scmp.eq.s32.totalorder %s21, 0
      // Predicated region
      $region41: #{neounet_loss.1} parent=39 // pred_check
        %p373 = pneg %p372
      $region42: #{neounet_loss.1} parent=39 // pred_check_branch
        %375 = sbr.rel (%p373) target = $region44
      $region43: #{neounet_loss.1} parent=39 // pred_region
        %376 = vst [vmem:[#allocation2] sm:$0xff] 0.0
        %377 = vst [vmem:[#allocation2 + $0x8] sm:$0xff] 0.0
        %378 = vst [vmem:[#allocation2 + $0x10] sm:$0xff] 0.0
        %379 = vst [vmem:[#allocation2 + $0x18] sm:$0xff] 0.0
        %380 = vst [vmem:[#allocation2 + $0x20] sm:$0xff] 0.0
        %381 = vst [vmem:[#allocation2 + $0x28] sm:$0xff] 0.0
        %382 = vst [vmem:[#allocation2 + $0x30] sm:$0xff] 0.0
        %383 = vst [vmem:[#allocation2 + $0x38] sm:$0xff] 0.0
        %384 = vst [vmem:[#allocation2 + $0x40] sm:$0xff] 0.0
        %385 = vst [vmem:[#allocation2 + $0x48] sm:$0xff] 0.0
        %386 = vst [vmem:[#allocation2 + $0x50] sm:$0xff] 0.0
        %387 = vst [vmem:[#allocation2 + $0x58] sm:$0xff] 0.0
        %388 = vst [vmem:[#allocation2 + $0x60] sm:$0xff] 0.0
        %389 = vst [vmem:[#allocation2 + $0x68] sm:$0xff] 0.0
        %390 = vst [vmem:[#allocation2 + $0x70] sm:$0xff] 0.0
        %391 = vst [vmem:[#allocation2 + $0x78] sm:$0xff] 0.0
        %392 = vst [vmem:[#allocation2 + $0x80] sm:$0xff] 0.0
        %393 = vst [vmem:[#allocation2 + $0x88] sm:$0xff] 0.0
        %394 = vst [vmem:[#allocation2 + $0x90] sm:$0xff] 0.0
        %395 = vst [vmem:[#allocation2 + $0x98] sm:$0xff] 0.0
        %396 = vst [vmem:[#allocation2 + $0xa0] sm:$0xff] 0.0
        %397 = vst [vmem:[#allocation2 + $0xa8] sm:$0xff] 0.0
        %398 = vst [vmem:[#allocation2 + $0xb0] sm:$0xff] 0.0
        %399 = vst [vmem:[#allocation2 + $0xb8] sm:$0xff] 0.0
        %400 = vst [vmem:[#allocation2 + $0xc0] sm:$0xff] 0.0
        %401 = vst [vmem:[#allocation2 + $0xc8] sm:$0xff] 0.0
        %402 = vst [vmem:[#allocation2 + $0xd0] sm:$0xff] 0.0
        %403 = vst [vmem:[#allocation2 + $0xd8] sm:$0xff] 0.0
        %404 = vst [vmem:[#allocation2 + $0xe0] sm:$0xff] 0.0
        %405 = vst [vmem:[#allocation2 + $0xe8] sm:$0xff] 0.0
        %406 = vst [vmem:[#allocation2 + $0xf0] sm:$0xff] 0.0
        %407 = vst [vmem:[#allocation2 + $0xf8] sm:$0xff] 0.0
        %408 = vst [vmem:[#allocation2 + $0x100] sm:$0xff] 0.0
        %409 = vst [vmem:[#allocation2 + $0x108] sm:$0xff] 0.0
        %410 = vst [vmem:[#allocation2 + $0x110] sm:$0xff] 0.0
        %411 = vst [vmem:[#allocation2 + $0x118] sm:$0xff] 0.0
        %412 = vst [vmem:[#allocation2 + $0x120] sm:$0xff] 0.0
        %413 = vst [vmem:[#allocation2 + $0x128] sm:$0xff] 0.0
      $region44: #{neounet_loss.1} parent=39 // pred_fallthru
        _
      %v414 = vld [vmem:[%s366] sm:$0x3]
      %s415 = scalar_lea.vmem %s366, 2
      %v416 = vld [vmem:[%s415] sm:$0x3]
      %v417 = vadd.f32 %v414, %v416
      %s418 = scalar_lea.vmem [#allocation2], 288
      %v419 = vld [vmem:[%s418] sm:$0x3]
      %v420 = vadd.f32 %v419, %v414
      %421 = vst [vmem:[%s418] sm:$0x3] %v420
      %s422 = scalar_lea.vmem [#allocation2], 296
      %v423 = vld [vmem:[%s422] sm:$0x3]
      %v424 = vadd.f32 %v423, %v416
      %425 = vst [vmem:[%s422] sm:$0x3] %v424
      %v426 = vld [vmem:[%s334] sm:$0x3]
      %s427 = scalar_lea.vmem %s334, 2
      %v428 = vld [vmem:[%s427] sm:$0x3]
      %v429 = vand.u32 2147483647, %v426
      %v430 = vsub.f32 0.0, %v429
      %v431 = vmul.f32 %v430, 1.442695
      %v432 = vpow.pop %v431
      %v433 = vadd.f32 %v432, 1.0
      %v434 = vrcp.pop %v433
      %v435 = vmul.f32 %v433, %v434
      %v436 = vsub.f32 2.0, %v435
      %v437 = vmul.f32 %v434, %v436
      %vm438 = vcmp.ge.f32.partialorder %v426, 0.0
      %v439 = vmul.f32 %v432, %v437
      %v440 = vsel %vm438, %v437, %v439
      %v441 = vmax.f32 %v426, 0.0
      %v442 = vadd.f32 %v432, 1.0
      %v443 = vlog2.pop %v442
      %v444 = vmul.f32 %v443, 0.6931472
      %v445 = vmul.f32 -0.5, %v432
      %v446 = vadd.f32 %v445, 1.0
      %v447 = vmul.f32 %v446, %v432
      %v448 = vand.u32 2147483647, %v432
      %vm449 = vcmp.lt.f32.partialorder %v448, 0.0004427343
      %v450 = vsel %vm449, %v447, %v444
      %v451 = vadd.f32 %v441, %v450
      %v452 = vand.u32 2147483647, %v428
      %v453 = vsub.f32 0.0, %v452
      %v454 = vmul.f32 %v453, 1.442695
      %v455 = vpow.pop %v454
      %v456 = vadd.f32 %v455, 1.0
      %v457 = vrcp.pop %v456
      %v458 = vmul.f32 %v456, %v457
      %v459 = vsub.f32 2.0, %v458
      %v460 = vmul.f32 %v457, %v459
      %vm461 = vcmp.ge.f32.partialorder %v428, 0.0
      %v462 = vmul.f32 %v455, %v460
      %v463 = vsel %vm461, %v460, %v462
      %v464 = vmax.f32 %v428, 0.0
      %v465 = vadd.f32 %v455, 1.0
      %v466 = vlog2.pop %v465
      %v467 = vmul.f32 %v466, 0.6931472
      %v468 = vmul.f32 -0.5, %v455
      %v469 = vadd.f32 %v468, 1.0
      %v470 = vmul.f32 %v469, %v455
      %v471 = vand.u32 2147483647, %v455
      %vm472 = vcmp.lt.f32.partialorder %v471, 0.0004427343
      %v473 = vsel %vm472, %v470, %v467
      %v474 = vadd.f32 %v464, %v473
      %v475 = vmul.f32 %v426, %v414
      %v476 = vsub.f32 %v451, %v475
      %v477 = vmul.f32 %v428, %v416
      %v478 = vsub.f32 %v474, %v477
      %vm479 = vcmp.gt.f32.partialorder %v426, %v428
      %vm480 = vcmp.gt.f32.partialorder %v428, %v426
      %v481 = vsel %vm480, %v428, 0.0
      %v482 = vsel %vm479, %v426, %v481
      %v483 = vsel %vm480, %v463, 0.5
      %v484 = vsel %vm479, %v440, %v483
      %v485 = vsel %vm480, %v474, 0.6931472
      %v486 = vsel %vm479, %v451, %v485
      %v487 = vmul.f32 %v482, %v417
      %v488 = vsub.f32 %v486, %v487
      %v489 = vld [vmem:[#allocation2] sm:$0x3]
      %v490 = vadd.f32 %v489, %v476
      %491 = vst [vmem:[#allocation2] sm:$0x3] %v490
      %v492 = vmul.f32 %v440, %v414
      %s493 = scalar_lea.vmem [#allocation2], 8
      %v494 = vld [vmem:[%s493] sm:$0x3]
      %v495 = vadd.f32 %v494, %v492
      %496 = vst [vmem:[%s493] sm:$0x3] %v495
      %s497 = scalar_lea.vmem [#allocation2], 16
      %v498 = vld [vmem:[%s497] sm:$0x3]
      %v499 = vadd.f32 %v498, %v440
      %500 = vst [vmem:[%s497] sm:$0x3] %v499
      %s501 = scalar_lea.vmem [#allocation2], 24
      %v502 = vld [vmem:[%s501] sm:$0x3]
      %v503 = vadd.f32 %v502, %v478
      %504 = vst [vmem:[%s501] sm:$0x3] %v503
      %v505 = vmul.f32 %v463, %v416
      %s506 = scalar_lea.vmem [#allocation2], 32
      %v507 = vld [vmem:[%s506] sm:$0x3]
      %v508 = vadd.f32 %v507, %v505
      %509 = vst [vmem:[%s506] sm:$0x3] %v508
      %s510 = scalar_lea.vmem [#allocation2], 40
      %v511 = vld [vmem:[%s510] sm:$0x3]
      %v512 = vadd.f32 %v511, %v463
      %513 = vst [vmem:[%s510] sm:$0x3] %v512
      %s514 = scalar_lea.vmem [#allocation2], 48
      %v515 = vld [vmem:[%s514] sm:$0x3]
      %v516 = vadd.f32 %v515, %v488
      %517 = vst [vmem:[%s514] sm:$0x3] %v516
      %v518 = vmul.f32 %v484, %v417
      %s519 = scalar_lea.vmem [#allocation2], 56
      %v520 = vld [vmem:[%s519] sm:$0x3]
      %v521 = vadd.f32 %v520, %v518
      %522 = vst [vmem:[%s519] sm:$0x3] %v521
      %s523 = scalar_lea.vmem [#allocation2], 64
      %v524 = vld [vmem:[%s523] sm:$0x3]
      %v525 = vadd.f32 %v524, %v484
      %526 = vst [vmem:[%s523] sm:$0x3] %v525
      %v527 = vld [vmem:[%s342] sm:$0x3]
      %s528 = scalar_lea.vmem %s342, 2
      %v529 = vld [vmem:[%s528] sm:$0x3]
      %v530 = vand.u32 2147483647, %v527
      %v531 = vsub.f32 0.0, %v530
      %v532 = vmul.f32 %v531, 1.442695
      %v533 = vpow.pop %v532
      %v534 = vadd.f32 %v533, 1.0
      %v535 = vrcp.pop %v534
      %v536 = vmul.f32 %v534, %v535
      %v537 = vsub.f32 2.0, %v536
      %v538 = vmul.f32 %v535, %v537
      %vm539 = vcmp.ge.f32.partialorder %v527, 0.0
      %v540 = vmul.f32 %v533, %v538
      %v541 = vsel %vm539, %v538, %v540
      %v542 = vmax.f32 %v527, 0.0
      %v543 = vadd.f32 %v533, 1.0
      %v544 = vlog2.pop %v543
      %v545 = vmul.f32 %v544, 0.6931472
      %v546 = vmul.f32 -0.5, %v533
      %v547 = vadd.f32 %v546, 1.0
      %v548 = vmul.f32 %v547, %v533
      %v549 = vand.u32 2147483647, %v533
      %vm550 = vcmp.lt.f32.partialorder %v549, 0.0004427343
      %v551 = vsel %vm550, %v548, %v545
      %v552 = vadd.f32 %v542, %v551
      %v553 = vand.u32 2147483647, %v529
      %v554 = vsub.f32 0.0, %v553
      %v555 = vmul.f32 %v554, 1.442695
      %v556 = vpow.pop %v555
      %v557 = vadd.f32 %v556, 1.0
      %v558 = vrcp.pop %v557
      %v559 = vmul.f32 %v557, %v558
      %v560 = vsub.f32 2.0, %v559
      %v561 = vmul.f32 %v558, %v560
      %vm562 = vcmp.ge.f32.partialorder %v529, 0.0
      %v563 = vmul.f32 %v556, %v561
      %v564 = vsel %vm562, %v561, %v563
      %v565 = vmax.f32 %v529, 0.0
      %v566 = vadd.f32 %v556, 1.0
      %v567 = vlog2.pop %v566
      %v568 = vmul.f32 %v567, 0.6931472
      %v569 = vmul.f32 -0.5, %v556
      %v570 = vadd.f32 %v569, 1.0
      %v571 = vmul.f32 %v570, %v556
      %v572 = vand.u32 2147483647, %v556
      %vm573 = vcmp.lt.f32.partialorder %v572, 0.0004427343
      %v574 = vsel %vm573, %v571, %v568
      %v575 = vadd.f32 %v565, %v574
      %v576 = vmul.f32 %v527, %v414
      %v577 = vsub.f32 %v552, %v576
      %v578 = vmul.f32 %v529, %v416
      %v579 = vsub.f32 %v575, %v578
      %vm580 = vcmp.gt.f32.partialorder %v527, %v529
      %vm581 = vcmp.gt.f32.partialorder %v529, %v527
      %v582 = vsel %vm581, %v529, 0.0
      %v583 = vsel %vm580, %v527, %v582
      %v584 = vsel %vm581, %v564, 0.5
      %v585 = vsel %vm580, %v541, %v584
      %v586 = vsel %vm581, %v575, 0.6931472
      %v587 = vsel %vm580, %v552, %v586
      %v588 = vmul.f32 %v583, %v417
      %v589 = vsub.f32 %v587, %v588
      %s590 = scalar_lea.vmem [#allocation2], 72
      %v591 = vld [vmem:[%s590] sm:$0x3]
      %v592 = vadd.f32 %v591, %v577
      %593 = vst [vmem:[%s590] sm:$0x3] %v592
      %v594 = vmul.f32 %v541, %v414
      %s595 = scalar_lea.vmem [#allocation2], 80
      %v596 = vld [vmem:[%s595] sm:$0x3]
      %v597 = vadd.f32 %v596, %v594
      %598 = vst [vmem:[%s595] sm:$0x3] %v597
      %s599 = scalar_lea.vmem [#allocation2], 88
      %v600 = vld [vmem:[%s599] sm:$0x3]
      %v601 = vadd.f32 %v600, %v541
      %602 = vst [vmem:[%s599] sm:$0x3] %v601
      %s603 = scalar_lea.vmem [#allocation2], 96
      %v604 = vld [vmem:[%s603] sm:$0x3]
      %v605 = vadd.f32 %v604, %v579
      %606 = vst [vmem:[%s603] sm:$0x3] %v605
      %v607 = vmul.f32 %v564, %v416
      %s608 = scalar_lea.vmem [#allocation2], 104
      %v609 = vld [vmem:[%s608] sm:$0x3]
      %v610 = vadd.f32 %v609, %v607
      %611 = vst [vmem:[%s608] sm:$0x3] %v610
      %s612 = scalar_lea.vmem [#allocation2], 112
      %v613 = vld [vmem:[%s612] sm:$0x3]
      %v614 = vadd.f32 %v613, %v564
      %615 = vst [vmem:[%s612] sm:$0x3] %v614
      %s616 = scalar_lea.vmem [#allocation2], 120
      %v617 = vld [vmem:[%s616] sm:$0x3]
      %v618 = vadd.f32 %v617, %v589
      %619 = vst [vmem:[%s616] sm:$0x3] %v618
      %v620 = vmul.f32 %v585, %v417
      %s621 = scalar_lea.vmem [#allocation2], 128
      %v622 = vld [vmem:[%s621] sm:$0x3]
      %v623 = vadd.f32 %v622, %v620
      %624 = vst [vmem:[%s621] sm:$0x3] %v623
      %s625 = scalar_lea.vmem [#allocation2], 136
      %v626 = vld [vmem:[%s625] sm:$0x3]
      %v627 = vadd.f32 %v626, %v585
      %628 = vst [vmem:[%s625] sm:$0x3] %v627
      %v629 = vld [vmem:[%s350] sm:$0x3]
      %s630 = scalar_lea.vmem %s350, 2
      %v631 = vld [vmem:[%s630] sm:$0x3]
      %v632 = vand.u32 2147483647, %v629
      %v633 = vsub.f32 0.0, %v632
      %v634 = vmul.f32 %v633, 1.442695
      %v635 = vpow.pop %v634
      %v636 = vadd.f32 %v635, 1.0
      %v637 = vrcp.pop %v636
      %v638 = vmul.f32 %v636, %v637
      %v639 = vsub.f32 2.0, %v638
      %v640 = vmul.f32 %v637, %v639
      %vm641 = vcmp.ge.f32.partialorder %v629, 0.0
      %v642 = vmul.f32 %v635, %v640
      %v643 = vsel %vm641, %v640, %v642
      %v644 = vmax.f32 %v629, 0.0
      %v645 = vadd.f32 %v635, 1.0
      %v646 = vlog2.pop %v645
      %v647 = vmul.f32 %v646, 0.6931472
      %v648 = vmul.f32 -0.5, %v635
      %v649 = vadd.f32 %v648, 1.0
      %v650 = vmul.f32 %v649, %v635
      %v651 = vand.u32 2147483647, %v635
      %vm652 = vcmp.lt.f32.partialorder %v651, 0.0004427343
      %v653 = vsel %vm652, %v650, %v647
      %v654 = vadd.f32 %v644, %v653
      %v655 = vand.u32 2147483647, %v631
      %v656 = vsub.f32 0.0, %v655
      %v657 = vmul.f32 %v656, 1.442695
      %v658 = vpow.pop %v657
      %v659 = vadd.f32 %v658, 1.0
      %v660 = vrcp.pop %v659
      %v661 = vmul.f32 %v659, %v660
      %v662 = vsub.f32 2.0, %v661
      %v663 = vmul.f32 %v660, %v662
      %vm664 = vcmp.ge.f32.partialorder %v631, 0.0
      %v665 = vmul.f32 %v658, %v663
      %v666 = vsel %vm664, %v663, %v665
      %v667 = vmax.f32 %v631, 0.0
      %v668 = vadd.f32 %v658, 1.0
      %v669 = vlog2.pop %v668
      %v670 = vmul.f32 %v669, 0.6931472
      %v671 = vmul.f32 -0.5, %v658
      %v672 = vadd.f32 %v671, 1.0
      %v673 = vmul.f32 %v672, %v658
      %v674 = vand.u32 2147483647, %v658
      %vm675 = vcmp.lt.f32.partialorder %v674, 0.0004427343
      %v676 = vsel %vm675, %v673, %v670
      %v677 = vadd.f32 %v667, %v676
      %v678 = vmul.f32 %v629, %v414
      %v679 = vsub.f32 %v654, %v678
      %v680 = vmul.f32 %v631, %v416
      %v681 = vsub.f32 %v677, %v680
      %vm682 = vcmp.gt.f32.partialorder %v629, %v631
      %vm683 = vcmp.gt.f32.partialorder %v631, %v629
      %v684 = vsel %vm683, %v631, 0.0
      %v685 = vsel %vm682, %v629, %v684
      %v686 = vsel %vm683, %v666, 0.5
      %v687 = vsel %vm682, %v643, %v686
      %v688 = vsel %vm683, %v677, 0.6931472
      %v689 = vsel %vm682, %v654, %v688
      %v690 = vmul.f32 %v685, %v417
      %v691 = vsub.f32 %v689, %v690
      %s692 = scalar_lea.vmem [#allocation2], 144
      %v693 = vld [vmem:[%s692] sm:$0x3]
      %v694 = vadd.f32 %v693, %v679
      %695 = vst [vmem:[%s692] sm:$0x3] %v694
      %v696 = vmul.f32 %v643, %v414
      %s697 = scalar_lea.vmem [#allocation2], 152
      %v698 = vld [vmem:[%s697] sm:$0x3]
      %v699 = vadd.f32 %v698, %v696
      %700 = vst [vmem:[%s697] sm:$0x3] %v699
      %s701 = scalar_lea.vmem [#allocation2], 160
      %v702 = vld [vmem:[%s701] sm:$0x3]
      %v703 = vadd.f32 %v702, %v643
      %704 = vst [vmem:[%s701] sm:$0x3] %v703
      %s705 = scalar_lea.vmem [#allocation2], 168
      %v706 = vld [vmem:[%s705] sm:$0x3]
      %v707 = vadd.f32 %v706, %v681
      %708 = vst [vmem:[%s705] sm:$0x3] %v707
      %v709 = vmul.f32 %v666, %v416
      %s710 = scalar_lea.vmem [#allocation2], 176
      %v711 = vld [vmem:[%s710] sm:$0x3]
      %v712 = vadd.f32 %v711, %v709
      %713 = vst [vmem:[%s710] sm:$0x3] %v712
      %s714 = scalar_lea.vmem [#allocation2], 184
      %v715 = vld [vmem:[%s714] sm:$0x3]
      %v716 = vadd.f32 %v715, %v666
      %717 = vst [vmem:[%s714] sm:$0x3] %v716
      %s718 = scalar_lea.vmem [#allocation2], 192
      %v719 = vld [vmem:[%s718] sm:$0x3]
      %v720 = vadd.f32 %v719, %v691
      %721 = vst [vmem:[%s718] sm:$0x3] %v720
      %v722 = vmul.f32 %v687, %v417
      %s723 = scalar_lea.vmem [#allocation2], 200
      %v724 = vld [vmem:[%s723] sm:$0x3]
      %v725 = vadd.f32 %v724, %v722
      %726 = vst [vmem:[%s723] sm:$0x3] %v725
      %s727 = scalar_lea.vmem [#allocation2], 208
      %v728 = vld [vmem:[%s727] sm:$0x3]
      %v729 = vadd.f32 %v728, %v687
      %730 = vst [vmem:[%s727] sm:$0x3] %v729
      %v731 = vld [vmem:[%s358] sm:$0x3]
      %s732 = scalar_lea.vmem %s358, 2
      %v733 = vld [vmem:[%s732] sm:$0x3]
      %v734 = vand.u32 2147483647, %v731
      %v735 = vsub.f32 0.0, %v734
      %v736 = vmul.f32 %v735, 1.442695
      %v737 = vpow.pop %v736
      %v738 = vadd.f32 %v737, 1.0
      %v739 = vrcp.pop %v738
      %v740 = vmul.f32 %v738, %v739
      %v741 = vsub.f32 2.0, %v740
      %v742 = vmul.f32 %v739, %v741
      %vm743 = vcmp.ge.f32.partialorder %v731, 0.0
      %v744 = vmul.f32 %v737, %v742
      %v745 = vsel %vm743, %v742, %v744
      %v746 = vmax.f32 %v731, 0.0
      %v747 = vadd.f32 %v737, 1.0
      %v748 = vlog2.pop %v747
      %v749 = vmul.f32 %v748, 0.6931472
      %v750 = vmul.f32 -0.5, %v737
      %v751 = vadd.f32 %v750, 1.0
      %v752 = vmul.f32 %v751, %v737
      %v753 = vand.u32 2147483647, %v737
      %vm754 = vcmp.lt.f32.partialorder %v753, 0.0004427343
      %v755 = vsel %vm754, %v752, %v749
      %v756 = vadd.f32 %v746, %v755
      %v757 = vand.u32 2147483647, %v733
      %v758 = vsub.f32 0.0, %v757
      %v759 = vmul.f32 %v758, 1.442695
      %v760 = vpow.pop %v759
      %v761 = vadd.f32 %v760, 1.0
      %v762 = vrcp.pop %v761
      %v763 = vmul.f32 %v761, %v762
      %v764 = vsub.f32 2.0, %v763
      %v765 = vmul.f32 %v762, %v764
      %vm766 = vcmp.ge.f32.partialorder %v733, 0.0
      %v767 = vmul.f32 %v760, %v765
      %v768 = vsel %vm766, %v765, %v767
      %v769 = vmax.f32 %v733, 0.0
      %v770 = vadd.f32 %v760, 1.0
      %v771 = vlog2.pop %v770
      %v772 = vmul.f32 %v771, 0.6931472
      %v773 = vmul.f32 -0.5, %v760
      %v774 = vadd.f32 %v773, 1.0
      %v775 = vmul.f32 %v774, %v760
      %v776 = vand.u32 2147483647, %v760
      %vm777 = vcmp.lt.f32.partialorder %v776, 0.0004427343
      %v778 = vsel %vm777, %v775, %v772
      %v779 = vadd.f32 %v769, %v778
      %v780 = vmul.f32 %v731, %v414
      %v781 = vsub.f32 %v756, %v780
      %v782 = vmul.f32 %v733, %v416
      %v783 = vsub.f32 %v779, %v782
      %vm784 = vcmp.gt.f32.partialorder %v731, %v733
      %vm785 = vcmp.gt.f32.partialorder %v733, %v731
      %v786 = vsel %vm785, %v733, 0.0
      %v787 = vsel %vm784, %v731, %v786
      %v788 = vsel %vm785, %v768, 0.5
      %v789 = vsel %vm784, %v745, %v788
      %v790 = vsel %vm785, %v779, 0.6931472
      %v791 = vsel %vm784, %v756, %v790
      %v792 = vmul.f32 %v787, %v417
      %v793 = vsub.f32 %v791, %v792
      %s794 = scalar_lea.vmem [#allocation2], 216
      %v795 = vld [vmem:[%s794] sm:$0x3]
      %v796 = vadd.f32 %v795, %v781
      %797 = vst [vmem:[%s794] sm:$0x3] %v796
      %v798 = vmul.f32 %v745, %v414
      %s799 = scalar_lea.vmem [#allocation2], 224
      %v800 = vld [vmem:[%s799] sm:$0x3]
      %v801 = vadd.f32 %v800, %v798
      %802 = vst [vmem:[%s799] sm:$0x3] %v801
      %s803 = scalar_lea.vmem [#allocation2], 232
      %v804 = vld [vmem:[%s803] sm:$0x3]
      %v805 = vadd.f32 %v804, %v745
      %806 = vst [vmem:[%s803] sm:$0x3] %v805
      %s807 = scalar_lea.vmem [#allocation2], 240
      %v808 = vld [vmem:[%s807] sm:$0x3]
      %v809 = vadd.f32 %v808, %v783
      %810 = vst [vmem:[%s807] sm:$0x3] %v809
      %v811 = vmul.f32 %v768, %v416
      %s812 = scalar_lea.vmem [#allocation2], 248
      %v813 = vld [vmem:[%s812] sm:$0x3]
      %v814 = vadd.f32 %v813, %v811
      %815 = vst [vmem:[%s812] sm:$0x3] %v814
      %s816 = scalar_lea.vmem [#allocation2], 256
      %v817 = vld [vmem:[%s816] sm:$0x3]
      %v818 = vadd.f32 %v817, %v768
      %819 = vst [vmem:[%s816] sm:$0x3] %v818
      %s820 = scalar_lea.vmem [#allocation2], 264
      %v821 = vld [vmem:[%s820] sm:$0x3]
      %v822 = vadd.f32 %v821, %v793
      %823 = vst [vmem:[%s820] sm:$0x3] %v822
      %v824 = vmul.f32 %v789, %v417
      %s825 = scalar_lea.vmem [#allocation2], 272
      %v826 = vld [vmem:[%s825] sm:$0x3]
      %v827 = vadd.f32 %v826, %v824
      %828 = vst [vmem:[%s825] sm:$0x3] %v827
      %s829 = scalar_lea.vmem [#allocation2], 280
      %v830 = vld [vmem:[%s829] sm:$0x3]
      %v831 = vadd.f32 %v830, %v789
      %832 = vst [vmem:[%s829] sm:$0x3] %v831
      // Predicated region
      $region45: #{neounet_loss.1} parent=39 // pred_check
        %p833 = pneg %p372
      $region46: #{neounet_loss.1} parent=39 // pred_check_branch
        %835 = sbr.rel (%p833) target = $region48
      $region47: #{neounet_loss.1} parent=39 // pred_region
        %v836 = vld [vmem:[#allocation2] sm:$0xff]
        %v837 = vld [vmem:[#allocation2 + $0x8] sm:$0xff]
        %v838 = vld [vmem:[#allocation2 + $0x10] sm:$0xff]
        %v839 = vld [vmem:[#allocation2 + $0x18] sm:$0xff]
        %v840 = vld [vmem:[#allocation2 + $0x20] sm:$0xff]
        %v841 = vld [vmem:[#allocation2 + $0x28] sm:$0xff]
        %v842 = vld [vmem:[#allocation2 + $0x30] sm:$0xff]
        %v843 = vld [vmem:[#allocation2 + $0x38] sm:$0xff]
        %v844 = vld [vmem:[#allocation2 + $0x40] sm:$0xff]
        %v845 = vld [vmem:[#allocation2 + $0x48] sm:$0xff]
        %v846 = vld [vmem:[#allocation2 + $0x50] sm:$0xff]
        %v847 = vld [vmem:[#allocation2 + $0x58] sm:$0xff]
        %v848 = vld [vmem:[#allocation2 + $0x60] sm:$0xff]
        %v849 = vld [vmem:[#allocation2 + $0x68] sm:$0xff]
        %v850 = vld [vmem:[#allocation2 + $0x70] sm:$0xff]
        %v851 = vld [vmem:[#allocation2 + $0x78] sm:$0xff]
        %v852 = vld [vmem:[#allocation2 + $0x80] sm:$0xff]
        %v853 = vld [vmem:[#allocation2 + $0x88] sm:$0xff]
        %v854 = vld [vmem:[#allocation2 + $0x90] sm:$0xff]
        %v855 = vld [vmem:[#allocation2 + $0x98] sm:$0xff]
        %v856 = vld [vmem:[#allocation2 + $0xa0] sm:$0xff]
        %v857 = vld [vmem:[#allocation2 + $0xa8] sm:$0xff]
        %v858 = vld [vmem:[#allocation2 + $0xb0] sm:$0xff]
        %v859 = vld [vmem:[#allocation2 + $0xb8] sm:$0xff]
        %v860 = vld [vmem:[#allocation2 + $0xc0] sm:$0xff]
        %v861 = vld [vmem:[#allocation2 + $0xc8] sm:$0xff]
        %v862 = vld [vmem:[#allocation2 + $0xd0] sm:$0xff]
        %v863 = vld [vmem:[#allocation2 + $0xd8] sm:$0xff]
        %v864 = vld [vmem:[#allocation2 + $0xe0] sm:$0xff]
        %v865 = vld [vmem:[#allocation2 + $0xe8] sm:$0xff]
        %v866 = vld [vmem:[#allocation2 + $0xf0] sm:$0xff]
        %v867 = vld [vmem:[#allocation2 + $0xf8] sm:$0xff]
        %v868 = vld [vmem:[#allocation2 + $0x100] sm:$0xff]
        %v869 = vld [vmem:[#allocation2 + $0x108] sm:$0xff]
        %v870 = vld [vmem:[#allocation2 + $0x110] sm:$0xff]
        %v871 = vld [vmem:[#allocation2 + $0x118] sm:$0xff]
        %v872 = vld [vmem:[#allocation2 + $0x120] sm:$0xff]
        %v873 = vld [vmem:[#allocation2 + $0x128] sm:$0xff]
        %874 = vst [vmem:[%s371] sm:$0xff] %v836
        %875 = vst [vmem:[%s371 + $0x8] sm:$0xff] %v837
        %876 = vst [vmem:[%s371 + $0x10] sm:$0xff] %v838
        %877 = vst [vmem:[%s371 + $0x18] sm:$0xff] %v839
        %878 = vst [vmem:[%s371 + $0x20] sm:$0xff] %v840
        %879 = vst [vmem:[%s371 + $0x28] sm:$0xff] %v841
        %880 = vst [vmem:[%s371 + $0x30] sm:$0xff] %v842
        %881 = vst [vmem:[%s371 + $0x38] sm:$0xff] %v843
        %882 = vst [vmem:[%s371 + $0x40] sm:$0xff] %v844
        %883 = vst [vmem:[%s371 + $0x48] sm:$0xff] %v845
        %884 = vst [vmem:[%s371 + $0x50] sm:$0xff] %v846
        %885 = vst [vmem:[%s371 + $0x58] sm:$0xff] %v847
        %886 = vst [vmem:[%s371 + $0x60] sm:$0xff] %v848
        %887 = vst [vmem:[%s371 + $0x68] sm:$0xff] %v849
        %888 = vst [vmem:[%s371 + $0x70] sm:$0xff] %v850
        %889 = vst [vmem:[%s371 + $0x78] sm:$0xff] %v851
        %890 = vst [vmem:[%s371 + $0x80] sm:$0xff] %v852
        %891 = vst [vmem:[%s371 + $0x88] sm:$0xff] %v853
        %892 = vst [vmem:[%s371 + $0x90] sm:$0xff] %v854
        %893 = vst [vmem:[%s371 + $0x98] sm:$0xff] %v855
        %894 = vst [vmem:[%s371 + $0xa0] sm:$0xff] %v856
        %895 = vst [vmem:[%s371 + $0xa8] sm:$0xff] %v857
        %896 = vst [vmem:[%s371 + $0xb0] sm:$0xff] %v858
        %897 = vst [vmem:[%s371 + $0xb8] sm:$0xff] %v859
        %898 = vst [vmem:[%s371 + $0xc0] sm:$0xff] %v860
        %899 = vst [vmem:[%s371 + $0xc8] sm:$0xff] %v861
        %900 = vst [vmem:[%s371 + $0xd0] sm:$0xff] %v862
        %901 = vst [vmem:[%s371 + $0xd8] sm:$0xff] %v863
        %902 = vst [vmem:[%s371 + $0xe0] sm:$0xff] %v864
        %903 = vst [vmem:[%s371 + $0xe8] sm:$0xff] %v865
        %904 = vst [vmem:[%s371 + $0xf0] sm:$0xff] %v866
        %905 = vst [vmem:[%s371 + $0xf8] sm:$0xff] %v867
        %906 = vst [vmem:[%s371 + $0x100] sm:$0xff] %v868
        %907 = vst [vmem:[%s371 + $0x108] sm:$0xff] %v869
        %908 = vst [vmem:[%s371 + $0x110] sm:$0xff] %v870
        %909 = vst [vmem:[%s371 + $0x118] sm:$0xff] %v871
        %910 = vst [vmem:[%s371 + $0x120] sm:$0xff] %v872
        %911 = vst [vmem:[%s371 + $0x128] sm:$0xff] %v873
      $region48: #{neounet_loss.1} parent=39 // pred_fallthru
        _
      %p912 = scmp.lt.s32.totalorder %s20, 1
      %s913 = scalar_select %p912, %s20, 1
      %s914 = smul.addr %s913, 38
      %s915 = smul.addr %s914, 8
      %s916 = scalar_lea.vmem %s5, %s915
      // Predicated region
      $region49: #{neounet_loss.1} parent=39 // pred_check
        %p917 = pneg %p186
      $region50: #{neounet_loss.1} parent=39 // pred_check_branch
        %919 = sbr.rel (%p917) target = $region52
      $region51: #{neounet_loss.1} parent=39 // pred_region
        _
      $region52: #{neounet_loss.1} parent=39 // pred_fallthru
        _
    $region40: #{neounet_loss.1} parent=5 // pred_fallthru
      _
    %p920 = scmp.le.s32.totalorder 2, %s11
    // Predicated region
    $region53: #{neounet_loss.1} parent=5 // pred_check
      %p921 = pneg %p920
    $region54: #{neounet_loss.1} parent=5 // pred_check_branch
      %923 = sbr.rel (%p921) target = $region56
    $region55: #{neounet_loss.1} parent=5 // pred_region
      %s924 = ssub.s32 %s11, 2
      // Predicated region
      $region57: #{neounet_loss.1} parent=55 // pred_check
        %p925 = pneg %p192
      $region58: #{neounet_loss.1} parent=55 // pred_check_branch
        %927 = sbr.rel (%p925) target = $region60
      $region59: #{neounet_loss.1} parent=55 // pred_region
        %p928 = scmp.lt.s32.totalorder %s22, 1
        %s929 = scalar_select %p928, %s22, 1
        %s930 = smul.addr %s929, 38
        %s931 = smul.addr %s930, 8
        %s932 = scalar_lea.vmem %s5, %s931
      $region60: #{neounet_loss.1} parent=55 // pred_fallthru
        _
    $region56: #{neounet_loss.1} parent=5 // pred_fallthru
      _
  $region6: #{neounet_loss.1} parent=0 // loop_footer
    %s15 = sadd.s32 1, %s11
  $region7: #{neounet_loss.1} parent=0 // loop_footer_branch
    %10 = sbr.rel target = $region3
  $region8: #{neounet_loss.1} parent=0 // loop_exit
    _

</llo_original>
